<compile_context>
chip_gen: v6e
topology: v6e:2x2x1
jax: 0.10.0
libtpu: 0.0.40
codegen_flags: <defaults>
</compile_context>

<pallas_src>
import functools
import math

import jax
import jax.numpy as jnp
from jax.experimental import pallas as pl
from jax.experimental.pallas import tpu as pltpu


# ---------------------------------------------------------------------------
# Tile-size selection: largest multiple of `align` that divides `dim` and is
# <= `preferred`; the full dim is always legal (used for small shapes).
# ---------------------------------------------------------------------------
def _pick_tile(dim, preferred, align):
    if dim <= preferred:
        return dim
    t = (preferred // align) * align
    while t >= align:
        if dim % t == 0:
            return t
        t -= align
    return dim  # fall back to the full (always-legal) dimension


# ---------------------------------------------------------------------------
# Generic tiled linear: y = x @ W + b
#   x: (M, K) bf16, W: (K, N) bf16, b: (1, N) f32  ->  (M, N) out_dtype
# ---------------------------------------------------------------------------
def _linear_kernel(x_ref, w_ref, b_ref, o_ref, acc_ref):
    kk = pl.program_id(2)

    @pl.when(kk == 0)
    def _init():
        acc_ref[...] = jnp.zeros_like(acc_ref)

    # bf16 streamed operands, f32 MXU accumulation.
    acc_ref[...] += jnp.dot(x_ref[...], w_ref[...],
                            preferred_element_type=jnp.float32)

    @pl.when(kk == pl.num_programs(2) - 1)
    def _finalize():
        o_ref[...] = (acc_ref[...] + b_ref[...]).astype(o_ref.dtype)


def _linear(x, w, b, *, out_dtype):
    M, K = x.shape
    Kw, N = w.shape
    assert K == Kw
    # Larger tiles per review: AI scales with tm*tn/(tm+tn); bf16 streams keep
    # double-buffered tiles (~6 MiB) far under the scoped-VMEM default.
    tm = _pick_tile(M, 512, 8)
    tn = _pick_tile(N, 512, 128)    # lane-dense output slab
    tk = _pick_tile(K, 1024, 128)
    grid = (M // tm, N // tn, K // tk)

    return pl.pallas_call(
        _linear_kernel,
        out_shape=jax.ShapeDtypeStruct((M, N), out_dtype),
        grid_spec=pltpu.PrefetchScalarGridSpec(
            num_scalar_prefetch=0,
            grid=grid,
            in_specs=[
                pl.BlockSpec((tm, tk), lambda i, j, k: (i, k)),
                pl.BlockSpec((tk, tn), lambda i, j, k: (k, j)),
                pl.BlockSpec((1, tn), lambda i, j, k: (0, j)),
            ],
            out_specs=pl.BlockSpec((tm, tn), lambda i, j, k: (i, j)),
            scratch_shapes=[pltpu.VMEM((tm, tn), jnp.float32)],
        ),
        compiler_params=pltpu.CompilerParams(
            dimension_semantics=("parallel", "parallel", "arbitrary")),
    )(x, w, b)


# ---------------------------------------------------------------------------
# Flash-attention kernel: grid = (B, q-tiles, kv-tiles); Q/K/V/out stay in the
# (B, S, D) layout and heads are static lane slices inside the kernel, so no
# wrapper-side transposes are needed.  Online softmax state lives in VMEM
# scratch and the kv axis is the reduction.
# ---------------------------------------------------------------------------
def _flash_attn_kernel(q_ref, k_ref, v_ref, o_ref, m_sc, l_sc, acc_sc, *,
                       scale, num_heads, dh):
    ki = pl.program_id(2)

    @pl.when(ki == 0)
    def _init():
        m_sc[...] = jnp.full_like(m_sc, -jnp.inf)
        l_sc[...] = jnp.zeros_like(l_sc)
        acc_sc[...] = jnp.zeros_like(acc_sc)

    q_all = q_ref[0]            # (tq, D) bf16  (resident across the kv loop)
    k_all = k_ref[0]            # (tk, D) bf16
    v_all = v_ref[0]            # (tk, D) bf16

    # Static head unroll: slices are compile-time views, no grid axis / no
    # relayout.  Softmax math stays in f32 (v5e-safe).
    for h in range(num_heads):
        lo, hi = h * dh, (h + 1) * dh
        q = q_all[:, lo:hi]                                   # (tq, dh) bf16
        k = k_all[:, lo:hi]                                   # (tk, dh) bf16
        v = v_all[:, lo:hi]                                   # (tk, dh) bf16

        # QK^T without an explicit transpose: contract the last dims.
        s = jnp.einsum("qd,kd->qk", q, k,
                       preferred_element_type=jnp.float32) * scale   # (tq, tk)

        m_prev = m_sc[h]                                      # (tq, 1) f32
        m_new = jnp.maximum(m_prev, jnp.max(s, axis=-1, keepdims=True))
        alpha = jnp.exp(m_prev - m_new)
        p = jnp.exp(s - m_new)                                # (tq, tk) f32

        l_sc[h] = alpha * l_sc[h] + jnp.sum(p, axis=-1, keepdims=True)
        acc_sc[h] = alpha * acc_sc[h] + jnp.dot(
            p.astype(jnp.bfloat16), v, preferred_element_type=jnp.float32)
        m_sc[h] = m_new

    @pl.when(ki == pl.num_programs(2) - 1)
    def _finalize():
        outs = []
        for h in range(num_heads):
            inv_l = pl.reciprocal(l_sc[h], approx=True)       # EUP slot
            outs.append(acc_sc[h] * inv_l)                    # (tq, dh) f32
        # One lane-dense (tq, D) store, already in the merged-head layout.
        o_ref[0] = jnp.concatenate(outs, axis=-1).astype(o_ref.dtype)


def _flash_attention(qp, kp, vp, *, num_heads):
    """qp: (B, Sq, D), kp/vp: (B, Skv, D) bf16 -> context (B, Sq, D) bf16."""
    B, Sq, D = qp.shape
    _, Skv, _ = kp.shape
    assert kp.shape == vp.shape
    dh = D // num_heads
    scale = 1.0 / math.sqrt(dh)

    tq = _pick_tile(Sq, 512, 8)
    tk = _pick_tile(Skv, 512, 128)
    grid = (B, Sq // tq, Skv // tk)

    q_spec = pl.BlockSpec((1, tq, D), lambda b, qi, ki: (b, qi, 0))
    kv_spec = pl.BlockSpec((1, tk, D), lambda b, qi, ki: (b, ki, 0))
    o_spec = pl.BlockSpec((1, tq, D), lambda b, qi, ki: (b, qi, 0))

    return pl.pallas_call(
        functools.partial(_flash_attn_kernel, scale=scale,
                          num_heads=num_heads, dh=dh),
        out_shape=jax.ShapeDtypeStruct((B, Sq, D), jnp.bfloat16),
        grid_spec=pltpu.PrefetchScalarGridSpec(
            num_scalar_prefetch=0,
            grid=grid,
            in_specs=[q_spec, kv_spec, kv_spec],
            out_specs=o_spec,
            scratch_shapes=[
                pltpu.VMEM((num_heads, tq, 1), jnp.float32),   # running max
                pltpu.VMEM((num_heads, tq, 1), jnp.float32),   # running sum
                pltpu.VMEM((num_heads, tq, dh), jnp.float32),  # output acc
            ],
        ),
        compiler_params=pltpu.CompilerParams(
            dimension_semantics=("parallel", "parallel", "arbitrary")),
    )(qp, kp, vp)


# ---------------------------------------------------------------------------
# Full MultiHeadAttention forward (eval mode, mask=None).
# ---------------------------------------------------------------------------
def multi_head_attention(query, key, value, params, *, num_heads):
    B, Sq, D = query.shape
    bf16 = jnp.bfloat16

    wq, wk, wv, wo = (params[n].astype(bf16) for n in ("wq", "wk", "wv", "wo"))
    bq, bk, bv, bo = (params[n].astype(jnp.float32)
                      for n in ("bq", "bk", "bv", "bo"))

    if (query is key) and (key is value):
        # Self-attention: fused QKV projection — one activation read, one
        # pipeline fill/drain, 3x-wider lane-dense output slab.
        x = query.reshape(B * Sq, D).astype(bf16)
        wqkv = jnp.concatenate([wq, wk, wv], axis=1)          # (D, 3D) bf16
        bqkv = jnp.concatenate([bq, bk, bv], axis=1)          # (1, 3D) f32
        qkv = _linear(x, wqkv, bqkv, out_dtype=bf16).reshape(B, Sq, 3 * D)
        qp = qkv[..., :D]
        kp = qkv[..., D:2 * D]
        vp = qkv[..., 2 * D:]
    else:
        # Cross-attention: separate projections (still bf16-streamed).
        _, Skv, _ = key.shape
        qp = _linear(query.reshape(B * Sq, D).astype(bf16), wq, bq,
                     out_dtype=bf16).reshape(B, Sq, D)
        kp = _linear(key.reshape(B * Skv, D).astype(bf16), wk, bk,
                     out_dtype=bf16).reshape(B, Skv, D)
        vp = _linear(value.reshape(B * Skv, D).astype(bf16), wv, bv,
                     out_dtype=bf16).reshape(B, Skv, D)

    ctx = _flash_attention(qp, kp, vp, num_heads=num_heads)   # (B, Sq, D) bf16

    out = _linear(ctx.reshape(B * Sq, D), wo, bo, out_dtype=jnp.float32)
    return out.reshape(B, Sq, D)


def _ref_mha(query, key, value, params, *, num_heads):
    """Pure-JAX f32 reference mirroring the PyTorch forward (eval mode)."""
    B, Sq, D = query.shape
    _, Skv, _ = key.shape
    dh = D // num_heads
    scale = 1.0 / math.sqrt(dh)

    def proj(x, w, b):
        return x @ w + b  # w already (in, out)

    def split(x, S):
        return x.reshape(B, S, num_heads, dh).transpose(0, 2, 1, 3)

    q = split(proj(query, params["wq"], params["bq"]), Sq)
    k = split(proj(key, params["wk"], params["bk"]), Skv)
    v = split(proj(value, params["wv"], params["bv"]), Skv)

    scores = jnp.einsum("bhqd,bhkd->bhqk", q, k) * scale
    attn = jax.nn.softmax(scores, axis=-1)
    ctx = jnp.einsum("bhqk,bhkd->bhqd", attn, v).transpose(0, 2, 1, 3)
    ctx = ctx.reshape(B, Sq, D)
    return ctx @ params["wo"] + params["bo"]


if __name__ == "__main__":
    # Small shapes consistent with the module: batch=2, seq=16, model_dim=32, heads=4.
    B, S, D, H = 2, 16, 32, 4

    root = jax.random.PRNGKey(0)
    ks = jax.random.split(root, 11)

    def winit(k):
        return jax.random.normal(k, (D, D), jnp.float32) * 0.1

    def binit(k):
        return jax.random.normal(k, (1, D), jnp.float32) * 0.1

    params = {
        "wq": winit(ks[0]), "bq": binit(ks[1]),
        "wk": winit(ks[2]), "bk": binit(ks[3]),
        "wv": winit(ks[4]), "bv": binit(ks[5]),
        "wo": winit(ks[6]), "bo": binit(ks[7]),
    }

    x = jax.random.normal(ks[8], (B, S, D), jnp.float32)
    key_in = jax.random.normal(ks[9], (B, S, D), jnp.float32)
    value_in = jax.random.normal(ks[10], (B, S, D), jnp.float32)

    # Self-attention (exercises the fused-QKV path).
    mha_self = jax.jit(lambda a, p: multi_head_attention(a, a, a, p, num_heads=H))
    out_self = jax.block_until_ready(mha_self(x, params))
    ref_self = _ref_mha(x, x, x, params, num_heads=H)

    # Cross-attention (exercises the separate-projection path).
    mha_cross = jax.jit(
        lambda q, k, v, p: multi_head_attention(q, k, v, p, num_heads=H))
    out_cross = jax.block_until_ready(mha_cross(x, key_in, value_in, params))
    ref_cross = _ref_mha(x, key_in, value_in, params, num_heads=H)

    for out, ref, name in ((out_self, ref_self, "self"),
                           (out_cross, ref_cross, "cross")):
        assert out.shape == (B, S, D)
        max_err = float(jnp.max(jnp.abs(out - ref)))
        # Tolerance reflects bf16 streaming + approx reciprocal (f32 accumulation);
        # structural bugs produce O(0.1) errors and are still caught.
        assert jnp.allclose(out, ref, atol=3e-2, rtol=3e-2), (
            f"{name}-attention mismatch vs. reference (max abs err {max_err})")

    print("KERNEL_OK")
</pallas_src>

<mosaic_0001>
module attributes {stable_mosaic.version = 11 : i64} {
  func.func @_linear_kernel(%arg0: i32, %arg1: i32, %arg2: i32, %arg3: memref<32x32xbf16, #tpu.memory_space<vmem>>, %arg4: memref<32x96xbf16, #tpu.memory_space<vmem>>, %arg5: memref<1x96xf32, #tpu.memory_space<vmem>>, %arg6: memref<32x96xbf16, #tpu.memory_space<vmem>>, %arg7: memref<32x96xf32, #tpu.memory_space<vmem>>) attributes {dimension_semantics = [#tpu.dimension_semantics<parallel>, #tpu.dimension_semantics<parallel>, #tpu.dimension_semantics<arbitrary>], iteration_bounds = array<i64: 1, 1, 1>, scalar_prefetch = 0 : i64, scratch_operands = 1 : i64, tpu.core_type = #tpu.core_type<tc>, window_params = [{transform_indices = @transform_0, window_bounds = array<i64: 32, 32>}, {transform_indices = @transform_1, window_bounds = array<i64: 32, 96>}, {transform_indices = @transform_2, window_bounds = array<i64: 1, 96>}, {transform_indices = @transform_3, window_bounds = array<i64: 32, 96>}]} {
    %c0_i32 = arith.constant 0 : i32
    %0 = arith.cmpi eq, %arg2, %c0_i32 : i32
    %1 = arith.extui %0 : i1 to i32
    %c0_i32_0 = arith.constant 0 : i32
    %2 = arith.cmpi ne, %1, %c0_i32_0 : i32
    scf.if %2 {
      %cst_10 = arith.constant 0.000000e+00 : f32
      %12 = vector.broadcast %cst_10 : f32 to vector<32x96xf32>
      %c0_11 = arith.constant 0 : index
      %c0_12 = arith.constant 0 : index
      %13 = vector.load %arg7[%c0_11, %c0_12] : memref<32x96xf32, #tpu.memory_space<vmem>>, vector<32x96xf32>
      tpu.vector_store %arg7[%c0_11, %c0_12], %12 {strides = array<i32>} : memref<32x96xf32, #tpu.memory_space<vmem>>, vector<32x96xf32>,
    } else {
    }
    %c0 = arith.constant 0 : index
    %c0_1 = arith.constant 0 : index
    %3 = vector.load %arg7[%c0, %c0_1] : memref<32x96xf32, #tpu.memory_space<vmem>>, vector<32x96xf32>
    %c0_2 = arith.constant 0 : index
    %c0_3 = arith.constant 0 : index
    %4 = vector.load %arg3[%c0_2, %c0_3] : memref<32x32xbf16, #tpu.memory_space<vmem>>, vector<32x32xbf16>
    %c0_4 = arith.constant 0 : index
    %c0_5 = arith.constant 0 : index
    %5 = vector.load %arg4[%c0_4, %c0_5] : memref<32x96xbf16, #tpu.memory_space<vmem>>, vector<32x96xbf16>
    %cst = arith.constant dense<0.000000e+00> : vector<32x96xf32>
    %6 = tpu.matmul %4, %5, %cst {dimension_numbers = #tpu.dot_dimension_numbers<[1], [0], [0], [1], [0, 0, 1, 1], [], []>} : vector<32x32xbf16>, vector<32x96xbf16>, vector<32x96xf32> -> vector<32x96xf32>
    %7 = arith.addf %3, %6 : vector<32x96xf32>
    %c0_6 = arith.constant 0 : index
    %c0_7 = arith.constant 0 : index
    %8 = vector.load %arg7[%c0_6, %c0_7] : memref<32x96xf32, #tpu.memory_space<vmem>>, vector<32x96xf32>
    tpu.vector_store %arg7[%c0_6, %c0_7], %7 {strides = array<i32>} : memref<32x96xf32, #tpu.memory_space<vmem>>, vector<32x96xf32>,
    %c0_i32_8 = arith.constant 0 : i32
    %9 = arith.cmpi eq, %arg2, %c0_i32_8 : i32
    %10 = arith.extui %9 : i1 to i32
    %c0_i32_9 = arith.constant 0 : i32
    %11 = arith.cmpi ne, %10, %c0_i32_9 : i32
    scf.if %11 {
      %c0_10 = arith.constant 0 : index
      %c0_11 = arith.constant 0 : index
      %12 = vector.load %arg7[%c0_10, %c0_11] : memref<32x96xf32, #tpu.memory_space<vmem>>, vector<32x96xf32>
      %c0_12 = arith.constant 0 : index
      %c0_13 = arith.constant 0 : index
      %13 = vector.load %arg5[%c0_12, %c0_13] : memref<1x96xf32, #tpu.memory_space<vmem>>, vector<1x96xf32>
      %14 = vector.broadcast %13 : vector<1x96xf32> to vector<32x96xf32>
      %15 = arith.addf %12, %14 : vector<32x96xf32>
      %16 = arith.truncf %15 : vector<32x96xf32> to vector<32x96xbf16>
      %c0_14 = arith.constant 0 : index
      %c0_15 = arith.constant 0 : index
      %17 = vector.load %arg6[%c0_14, %c0_15] : memref<32x96xbf16, #tpu.memory_space<vmem>>, vector<32x96xbf16>
      tpu.vector_store %arg6[%c0_14, %c0_15], %16 {strides = array<i32>} : memref<32x96xbf16, #tpu.memory_space<vmem>>, vector<32x96xbf16>,
    } else {
    }
    return
  }
  func.func @transform_0(%arg0: i32, %arg1: i32, %arg2: i32) -> (i32, i32) {
    %c0_i32 = arith.constant 0 : i32
    return %arg0, %arg2 : i32, i32
  }
  func.func @transform_1(%arg0: i32, %arg1: i32, %arg2: i32) -> (i32, i32) {
    %c0_i32 = arith.constant 0 : i32
    return %arg2, %arg1 : i32, i32
  }
  func.func @transform_2(%arg0: i32, %arg1: i32, %arg2: i32) -> (i32, i32) {
    %c0_i32 = arith.constant 0 : i32
    %c0_i32_0 = arith.constant 0 : i32
    return %c0_i32, %arg1 : i32, i32
  }
  func.func @transform_3(%arg0: i32, %arg1: i32, %arg2: i32) -> (i32, i32) {
    %c0_i32 = arith.constant 0 : i32
    return %arg0, %arg1 : i32, i32
  }
}

module attributes {stable_mosaic.version = 11 : i64} {
  func.func @_flash_attn_kernel(%arg0: i32, %arg1: i32, %arg2: i32, %arg3: memref<1x16x32xbf16, #tpu.memory_space<vmem>>, %arg4: memref<1x16x32xbf16, #tpu.memory_space<vmem>>, %arg5: memref<1x16x32xbf16, #tpu.memory_space<vmem>>, %arg6: memref<1x16x32xbf16, #tpu.memory_space<vmem>>, %arg7: memref<4x16x1xf32, #tpu.memory_space<vmem>>, %arg8: memref<4x16x1xf32, #tpu.memory_space<vmem>>, %arg9: memref<4x16x8xf32, #tpu.memory_space<vmem>>) attributes {dimension_semantics = [#tpu.dimension_semantics<parallel>, #tpu.dimension_semantics<parallel>, #tpu.dimension_semantics<arbitrary>], iteration_bounds = array<i64: 2, 1, 1>, scalar_prefetch = 0 : i64, scratch_operands = 3 : i64, tpu.core_type = #tpu.core_type<tc>, window_params = [{transform_indices = @transform_0, window_bounds = array<i64: 1, 16, 32>}, {transform_indices = @transform_1, window_bounds = array<i64: 1, 16, 32>}, {transform_indices = @transform_2, window_bounds = array<i64: 1, 16, 32>}, {transform_indices = @transform_3, window_bounds = array<i64: 1, 16, 32>}]} {
    %c0_i32 = arith.constant 0 : i32
    %0 = arith.cmpi eq, %arg2, %c0_i32 : i32
    %1 = arith.extui %0 : i1 to i32
    %c0_i32_0 = arith.constant 0 : i32
    %2 = arith.cmpi ne, %1, %c0_i32_0 : i32
    scf.if %2 {
      %cst_99 = arith.constant 0xFF800000 : f32
      %164 = vector.broadcast %cst_99 : f32 to vector<4x16x1xf32>
      %c0_100 = arith.constant 0 : index
      %c0_101 = arith.constant 0 : index
      %c0_102 = arith.constant 0 : index
      %165 = vector.load %arg7[%c0_100, %c0_101, %c0_102] : memref<4x16x1xf32, #tpu.memory_space<vmem>>, vector<4x16x1xf32>
      tpu.vector_store %arg7[%c0_100, %c0_101, %c0_102], %164 {strides = array<i32>} : memref<4x16x1xf32, #tpu.memory_space<vmem>>, vector<4x16x1xf32>,
      %cst_103 = arith.constant 0.000000e+00 : f32
      %166 = vector.broadcast %cst_103 : f32 to vector<4x16x1xf32>
      %c0_104 = arith.constant 0 : index
      %c0_105 = arith.constant 0 : index
      %c0_106 = arith.constant 0 : index
      %167 = vector.load %arg8[%c0_104, %c0_105, %c0_106] : memref<4x16x1xf32, #tpu.memory_space<vmem>>, vector<4x16x1xf32>
      tpu.vector_store %arg8[%c0_104, %c0_105, %c0_106], %166 {strides = array<i32>} : memref<4x16x1xf32, #tpu.memory_space<vmem>>, vector<4x16x1xf32>,
      %cst_107 = arith.constant 0.000000e+00 : f32
      %168 = vector.broadcast %cst_107 : f32 to vector<4x16x8xf32>
      %c0_108 = arith.constant 0 : index
      %c0_109 = arith.constant 0 : index
      %c0_110 = arith.constant 0 : index
      %169 = vector.load %arg9[%c0_108, %c0_109, %c0_110] : memref<4x16x8xf32, #tpu.memory_space<vmem>>, vector<4x16x8xf32>
      tpu.vector_store %arg9[%c0_108, %c0_109, %c0_110], %168 {strides = array<i32>} : memref<4x16x8xf32, #tpu.memory_space<vmem>>, vector<4x16x8xf32>,
    } else {
    }
    %c0 = arith.constant 0 : index
    %c0_1 = arith.constant 0 : index
    %c0_2 = arith.constant 0 : index
    %3 = vector.load %arg3[%c0, %c0_1, %c0_2] : memref<1x16x32xbf16, #tpu.memory_space<vmem>>, vector<1x16x32xbf16>
    %4 = vector.shape_cast %3 : vector<1x16x32xbf16> to vector<16x32xbf16>
    %c0_3 = arith.constant 0 : index
    %c0_4 = arith.constant 0 : index
    %c0_5 = arith.constant 0 : index
    %5 = vector.load %arg4[%c0_3, %c0_4, %c0_5] : memref<1x16x32xbf16, #tpu.memory_space<vmem>>, vector<1x16x32xbf16>
    %6 = vector.shape_cast %5 : vector<1x16x32xbf16> to vector<16x32xbf16>
    %c0_6 = arith.constant 0 : index
    %c0_7 = arith.constant 0 : index
    %c0_8 = arith.constant 0 : index
    %7 = vector.load %arg5[%c0_6, %c0_7, %c0_8] : memref<1x16x32xbf16, #tpu.memory_space<vmem>>, vector<1x16x32xbf16>
    %8 = vector.shape_cast %7 : vector<1x16x32xbf16> to vector<16x32xbf16>
    %9 = vector.extract_strided_slice %4 {offsets = [0, 0], sizes = [16, 8], strides = [1, 1]} : vector<16x32xbf16> to vector<16x8xbf16>
    %10 = vector.extract_strided_slice %6 {offsets = [0, 0], sizes = [16, 8], strides = [1, 1]} : vector<16x32xbf16> to vector<16x8xbf16>
    %11 = vector.extract_strided_slice %8 {offsets = [0, 0], sizes = [16, 8], strides = [1, 1]} : vector<16x32xbf16> to vector<16x8xbf16>
    "tpu.trace_start"() <{level = 10 : i32, message = "qd,kd->qk"}> : () -> ()
    %cst = arith.constant dense<0.000000e+00> : vector<16x16xf32>
    %12 = tpu.matmul %9, %10, %cst {dimension_numbers = #tpu.dot_dimension_numbers<[1], [1], [0], [0], [0, 0, 1, 0], [], []>} : vector<16x8xbf16>, vector<16x8xbf16>, vector<16x16xf32> -> vector<16x16xf32>
    "tpu.trace_stop"() : () -> ()
    %cst_9 = arith.constant 0.353553385 : f32
    %13 = vector.broadcast %cst_9 : f32 to vector<16x16xf32>
    %14 = arith.mulf %12, %13 : vector<16x16xf32>
    %c0_10 = arith.constant 0 : index
    %c0_11 = arith.constant 0 : index
    %c0_12 = arith.constant 0 : index
    %15 = vector.load %arg7[%c0_10, %c0_11, %c0_12] : memref<4x16x1xf32, #tpu.memory_space<vmem>>, vector<1x16x1xf32>
    %16 = vector.shape_cast %15 : vector<1x16x1xf32> to vector<16x1xf32>
    %cst_13 = arith.constant dense<0xFF800000> : vector<16xf32>
    %17 = vector.multi_reduction <maximumf>, %14, %cst_13 [1] : vector<16x16xf32> to vector<16xf32>
    %18 = vector.shape_cast %17 : vector<16xf32> to vector<16x1xf32>
    %19 = arith.maximumf %16, %18 : vector<16x1xf32>
    %20 = arith.subf %16, %19 : vector<16x1xf32>
    %21 = math.exp %20 : vector<16x1xf32>
    %22 = vector.broadcast %19 : vector<16x1xf32> to vector<16x16xf32>
    %23 = arith.subf %14, %22 : vector<16x16xf32>
    %24 = math.exp %23 : vector<16x16xf32>
    %c0_14 = arith.constant 0 : index
    %c0_15 = arith.constant 0 : index
    %c0_16 = arith.constant 0 : index
    %25 = vector.load %arg8[%c0_14, %c0_15, %c0_16] : memref<4x16x1xf32, #tpu.memory_space<vmem>>, vector<1x16x1xf32>
    %26 = vector.shape_cast %25 : vector<1x16x1xf32> to vector<16x1xf32>
    %27 = arith.mulf %21, %26 : vector<16x1xf32>
    %cst_17 = arith.constant dense<0.000000e+00> : vector<16xf32>
    %28 = vector.multi_reduction <add>, %24, %cst_17 [1] : vector<16x16xf32> to vector<16xf32>
    %29 = vector.shape_cast %28 : vector<16xf32> to vector<16x1xf32>
    %30 = arith.addf %27, %29 : vector<16x1xf32>
    %c0_18 = arith.constant 0 : index
    %c0_19 = arith.constant 0 : index
    %c0_20 = arith.constant 0 : index
    %31 = vector.load %arg8[%c0_18, %c0_19, %c0_20] : memref<4x16x1xf32, #tpu.memory_space<vmem>>, vector<1x16x1xf32>
    %32 = vector.shape_cast %31 : vector<1x16x1xf32> to vector<16x1xf32>
    %33 = vector.shape_cast %30 : vector<16x1xf32> to vector<1x16x1xf32>
    tpu.vector_store %arg8[%c0_18, %c0_19, %c0_20], %33 {strides = array<i32>} : memref<4x16x1xf32, #tpu.memory_space<vmem>>, vector<1x16x1xf32>,
    %c0_21 = arith.constant 0 : index
    %c0_22 = arith.constant 0 : index
    %c0_23 = arith.constant 0 : index
    %34 = vector.load %arg9[%c0_21, %c0_22, %c0_23] : memref<4x16x8xf32, #tpu.memory_space<vmem>>, vector<1x16x8xf32>
    %35 = vector.shape_cast %34 : vector<1x16x8xf32> to vector<16x8xf32>
    %36 = vector.broadcast %21 : vector<16x1xf32> to vector<16x8xf32>
    %37 = arith.mulf %36, %35 : vector<16x8xf32>
    %38 = arith.truncf %24 : vector<16x16xf32> to vector<16x16xbf16>
    %cst_24 = arith.constant dense<0.000000e+00> : vector<16x8xf32>
    %39 = tpu.matmul %38, %11, %cst_24 {dimension_numbers = #tpu.dot_dimension_numbers<[1], [0], [0], [1], [0, 0, 1, 1], [], []>} : vector<16x16xbf16>, vector<16x8xbf16>, vector<16x8xf32> -> vector<16x8xf32>
    %40 = arith.addf %37, %39 : vector<16x8xf32>
    %c0_25 = arith.constant 0 : index
    %c0_26 = arith.constant 0 : index
    %c0_27 = arith.constant 0 : index
    %41 = vector.load %arg9[%c0_25, %c0_26, %c0_27] : memref<4x16x8xf32, #tpu.memory_space<vmem>>, vector<1x16x8xf32>
    %42 = vector.shape_cast %41 : vector<1x16x8xf32> to vector<16x8xf32>
    %43 = vector.shape_cast %40 : vector<16x8xf32> to vector<1x16x8xf32>
    tpu.vector_store %arg9[%c0_25, %c0_26, %c0_27], %43 {strides = array<i32>} : memref<4x16x8xf32, #tpu.memory_space<vmem>>, vector<1x16x8xf32>,
    %c0_28 = arith.constant 0 : index
    %c0_29 = arith.constant 0 : index
    %c0_30 = arith.constant 0 : index
    %44 = vector.load %arg7[%c0_28, %c0_29, %c0_30] : memref<4x16x1xf32, #tpu.memory_space<vmem>>, vector<1x16x1xf32>
    %45 = vector.shape_cast %44 : vector<1x16x1xf32> to vector<16x1xf32>
    %46 = vector.shape_cast %19 : vector<16x1xf32> to vector<1x16x1xf32>
    tpu.vector_store %arg7[%c0_28, %c0_29, %c0_30], %46 {strides = array<i32>} : memref<4x16x1xf32, #tpu.memory_space<vmem>>, vector<1x16x1xf32>,
    %47 = vector.extract_strided_slice %4 {offsets = [0, 8], sizes = [16, 8], strides = [1, 1]} : vector<16x32xbf16> to vector<16x8xbf16>
    %48 = vector.extract_strided_slice %6 {offsets = [0, 8], sizes = [16, 8], strides = [1, 1]} : vector<16x32xbf16> to vector<16x8xbf16>
    %49 = vector.extract_strided_slice %8 {offsets = [0, 8], sizes = [16, 8], strides = [1, 1]} : vector<16x32xbf16> to vector<16x8xbf16>
    "tpu.trace_start"() <{level = 10 : i32, message = "qd,kd->qk"}> : () -> ()
    %cst_31 = arith.constant dense<0.000000e+00> : vector<16x16xf32>
    %50 = tpu.matmul %47, %48, %cst_31 {dimension_numbers = #tpu.dot_dimension_numbers<[1], [1], [0], [0], [0, 0, 1, 0], [], []>} : vector<16x8xbf16>, vector<16x8xbf16>, vector<16x16xf32> -> vector<16x16xf32>
    "tpu.trace_stop"() : () -> ()
    %cst_32 = arith.constant 0.353553385 : f32
    %51 = vector.broadcast %cst_32 : f32 to vector<16x16xf32>
    %52 = arith.mulf %50, %51 : vector<16x16xf32>
    %c1 = arith.constant 1 : index
    %c0_33 = arith.constant 0 : index
    %c0_34 = arith.constant 0 : index
    %53 = vector.load %arg7[%c1, %c0_33, %c0_34] : memref<4x16x1xf32, #tpu.memory_space<vmem>>, vector<1x16x1xf32>
    %54 = vector.shape_cast %53 : vector<1x16x1xf32> to vector<16x1xf32>
    %cst_35 = arith.constant dense<0xFF800000> : vector<16xf32>
    %55 = vector.multi_reduction <maximumf>, %52, %cst_35 [1] : vector<16x16xf32> to vector<16xf32>
    %56 = vector.shape_cast %55 : vector<16xf32> to vector<16x1xf32>
    %57 = arith.maximumf %54, %56 : vector<16x1xf32>
    %58 = arith.subf %54, %57 : vector<16x1xf32>
    %59 = math.exp %58 : vector<16x1xf32>
    %60 = vector.broadcast %57 : vector<16x1xf32> to vector<16x16xf32>
    %61 = arith.subf %52, %60 : vector<16x16xf32>
    %62 = math.exp %61 : vector<16x16xf32>
    %c1_36 = arith.constant 1 : index
    %c0_37 = arith.constant 0 : index
    %c0_38 = arith.constant 0 : index
    %63 = vector.load %arg8[%c1_36, %c0_37, %c0_38] : memref<4x16x1xf32, #tpu.memory_space<vmem>>, vector<1x16x1xf32>
    %64 = vector.shape_cast %63 : vector<1x16x1xf32> to vector<16x1xf32>
    %65 = arith.mulf %59, %64 : vector<16x1xf32>
    %cst_39 = arith.constant dense<0.000000e+00> : vector<16xf32>
    %66 = vector.multi_reduction <add>, %62, %cst_39 [1] : vector<16x16xf32> to vector<16xf32>
    %67 = vector.shape_cast %66 : vector<16xf32> to vector<16x1xf32>
    %68 = arith.addf %65, %67 : vector<16x1xf32>
    %c1_40 = arith.constant 1 : index
    %c0_41 = arith.constant 0 : index
    %c0_42 = arith.constant 0 : index
    %69 = vector.load %arg8[%c1_40, %c0_41, %c0_42] : memref<4x16x1xf32, #tpu.memory_space<vmem>>, vector<1x16x1xf32>
    %70 = vector.shape_cast %69 : vector<1x16x1xf32> to vector<16x1xf32>
    %71 = vector.shape_cast %68 : vector<16x1xf32> to vector<1x16x1xf32>
    tpu.vector_store %arg8[%c1_40, %c0_41, %c0_42], %71 {strides = array<i32>} : memref<4x16x1xf32, #tpu.memory_space<vmem>>, vector<1x16x1xf32>,
    %c1_43 = arith.constant 1 : index
    %c0_44 = arith.constant 0 : index
    %c0_45 = arith.constant 0 : index
    %72 = vector.load %arg9[%c1_43, %c0_44, %c0_45] : memref<4x16x8xf32, #tpu.memory_space<vmem>>, vector<1x16x8xf32>
    %73 = vector.shape_cast %72 : vector<1x16x8xf32> to vector<16x8xf32>
    %74 = vector.broadcast %59 : vector<16x1xf32> to vector<16x8xf32>
    %75 = arith.mulf %74, %73 : vector<16x8xf32>
    %76 = arith.truncf %62 : vector<16x16xf32> to vector<16x16xbf16>
    %cst_46 = arith.constant dense<0.000000e+00> : vector<16x8xf32>
    %77 = tpu.matmul %76, %49, %cst_46 {dimension_numbers = #tpu.dot_dimension_numbers<[1], [0], [0], [1], [0, 0, 1, 1], [], []>} : vector<16x16xbf16>, vector<16x8xbf16>, vector<16x8xf32> -> vector<16x8xf32>
    %78 = arith.addf %75, %77 : vector<16x8xf32>
    %c1_47 = arith.constant 1 : index
    %c0_48 = arith.constant 0 : index
    %c0_49 = arith.constant 0 : index
    %79 = vector.load %arg9[%c1_47, %c0_48, %c0_49] : memref<4x16x8xf32, #tpu.memory_space<vmem>>, vector<1x16x8xf32>
    %80 = vector.shape_cast %79 : vector<1x16x8xf32> to vector<16x8xf32>
    %81 = vector.shape_cast %78 : vector<16x8xf32> to vector<1x16x8xf32>
    tpu.vector_store %arg9[%c1_47, %c0_48, %c0_49], %81 {strides = array<i32>} : memref<4x16x8xf32, #tpu.memory_space<vmem>>, vector<1x16x8xf32>,
    %c1_50 = arith.constant 1 : index
    %c0_51 = arith.constant 0 : index
    %c0_52 = arith.constant 0 : index
    %82 = vector.load %arg7[%c1_50, %c0_51, %c0_52] : memref<4x16x1xf32, #tpu.memory_space<vmem>>, vector<1x16x1xf32>
    %83 = vector.shape_cast %82 : vector<1x16x1xf32> to vector<16x1xf32>
    %84 = vector.shape_cast %57 : vector<16x1xf32> to vector<1x16x1xf32>
    tpu.vector_store %arg7[%c1_50, %c0_51, %c0_52], %84 {strides = array<i32>} : memref<4x16x1xf32, #tpu.memory_space<vmem>>, vector<1x16x1xf32>,
    %85 = vector.extract_strided_slice %4 {offsets = [0, 16], sizes = [16, 8], strides = [1, 1]} : vector<16x32xbf16> to vector<16x8xbf16>
    %86 = vector.extract_strided_slice %6 {offsets = [0, 16], sizes = [16, 8], strides = [1, 1]} : vector<16x32xbf16> to vector<16x8xbf16>
    %87 = vector.extract_strided_slice %8 {offsets = [0, 16], sizes = [16, 8], strides = [1, 1]} : vector<16x32xbf16> to vector<16x8xbf16>
    "tpu.trace_start"() <{level = 10 : i32, message = "qd,kd->qk"}> : () -> ()
    %cst_53 = arith.constant dense<0.000000e+00> : vector<16x16xf32>
    %88 = tpu.matmul %85, %86, %cst_53 {dimension_numbers = #tpu.dot_dimension_numbers<[1], [1], [0], [0], [0, 0, 1, 0], [], []>} : vector<16x8xbf16>, vector<16x8xbf16>, vector<16x16xf32> -> vector<16x16xf32>
    "tpu.trace_stop"() : () -> ()
    %cst_54 = arith.constant 0.353553385 : f32
    %89 = vector.broadcast %cst_54 : f32 to vector<16x16xf32>
    %90 = arith.mulf %88, %89 : vector<16x16xf32>
    %c2 = arith.constant 2 : index
    %c0_55 = arith.constant 0 : index
    %c0_56 = arith.constant 0 : index
    %91 = vector.load %arg7[%c2, %c0_55, %c0_56] : memref<4x16x1xf32, #tpu.memory_space<vmem>>, vector<1x16x1xf32>
    %92 = vector.shape_cast %91 : vector<1x16x1xf32> to vector<16x1xf32>
    %cst_57 = arith.constant dense<0xFF800000> : vector<16xf32>
    %93 = vector.multi_reduction <maximumf>, %90, %cst_57 [1] : vector<16x16xf32> to vector<16xf32>
    %94 = vector.shape_cast %93 : vector<16xf32> to vector<16x1xf32>
    %95 = arith.maximumf %92, %94 : vector<16x1xf32>
    %96 = arith.subf %92, %95 : vector<16x1xf32>
    %97 = math.exp %96 : vector<16x1xf32>
    %98 = vector.broadcast %95 : vector<16x1xf32> to vector<16x16xf32>
    %99 = arith.subf %90, %98 : vector<16x16xf32>
    %100 = math.exp %99 : vector<16x16xf32>
    %c2_58 = arith.constant 2 : index
    %c0_59 = arith.constant 0 : index
    %c0_60 = arith.constant 0 : index
    %101 = vector.load %arg8[%c2_58, %c0_59, %c0_60] : memref<4x16x1xf32, #tpu.memory_space<vmem>>, vector<1x16x1xf32>
    %102 = vector.shape_cast %101 : vector<1x16x1xf32> to vector<16x1xf32>
    %103 = arith.mulf %97, %102 : vector<16x1xf32>
    %cst_61 = arith.constant dense<0.000000e+00> : vector<16xf32>
    %104 = vector.multi_reduction <add>, %100, %cst_61 [1] : vector<16x16xf32> to vector<16xf32>
    %105 = vector.shape_cast %104 : vector<16xf32> to vector<16x1xf32>
    %106 = arith.addf %103, %105 : vector<16x1xf32>
    %c2_62 = arith.constant 2 : index
    %c0_63 = arith.constant 0 : index
    %c0_64 = arith.constant 0 : index
    %107 = vector.load %arg8[%c2_62, %c0_63, %c0_64] : memref<4x16x1xf32, #tpu.memory_space<vmem>>, vector<1x16x1xf32>
    %108 = vector.shape_cast %107 : vector<1x16x1xf32> to vector<16x1xf32>
    %109 = vector.shape_cast %106 : vector<16x1xf32> to vector<1x16x1xf32>
    tpu.vector_store %arg8[%c2_62, %c0_63, %c0_64], %109 {strides = array<i32>} : memref<4x16x1xf32, #tpu.memory_space<vmem>>, vector<1x16x1xf32>,
    %c2_65 = arith.constant 2 : index
    %c0_66 = arith.constant 0 : index
    %c0_67 = arith.constant 0 : index
    %110 = vector.load %arg9[%c2_65, %c0_66, %c0_67] : memref<4x16x8xf32, #tpu.memory_space<vmem>>, vector<1x16x8xf32>
    %111 = vector.shape_cast %110 : vector<1x16x8xf32> to vector<16x8xf32>
    %112 = vector.broadcast %97 : vector<16x1xf32> to vector<16x8xf32>
    %113 = arith.mulf %112, %111 : vector<16x8xf32>
    %114 = arith.truncf %100 : vector<16x16xf32> to vector<16x16xbf16>
    %cst_68 = arith.constant dense<0.000000e+00> : vector<16x8xf32>
    %115 = tpu.matmul %114, %87, %cst_68 {dimension_numbers = #tpu.dot_dimension_numbers<[1], [0], [0], [1], [0, 0, 1, 1], [], []>} : vector<16x16xbf16>, vector<16x8xbf16>, vector<16x8xf32> -> vector<16x8xf32>
    %116 = arith.addf %113, %115 : vector<16x8xf32>
    %c2_69 = arith.constant 2 : index
    %c0_70 = arith.constant 0 : index
    %c0_71 = arith.constant 0 : index
    %117 = vector.load %arg9[%c2_69, %c0_70, %c0_71] : memref<4x16x8xf32, #tpu.memory_space<vmem>>, vector<1x16x8xf32>
    %118 = vector.shape_cast %117 : vector<1x16x8xf32> to vector<16x8xf32>
    %119 = vector.shape_cast %116 : vector<16x8xf32> to vector<1x16x8xf32>
    tpu.vector_store %arg9[%c2_69, %c0_70, %c0_71], %119 {strides = array<i32>} : memref<4x16x8xf32, #tpu.memory_space<vmem>>, vector<1x16x8xf32>,
    %c2_72 = arith.constant 2 : index
    %c0_73 = arith.constant 0 : index
    %c0_74 = arith.constant 0 : index
    %120 = vector.load %arg7[%c2_72, %c0_73, %c0_74] : memref<4x16x1xf32, #tpu.memory_space<vmem>>, vector<1x16x1xf32>
    %121 = vector.shape_cast %120 : vector<1x16x1xf32> to vector<16x1xf32>
    %122 = vector.shape_cast %95 : vector<16x1xf32> to vector<1x16x1xf32>
    tpu.vector_store %arg7[%c2_72, %c0_73, %c0_74], %122 {strides = array<i32>} : memref<4x16x1xf32, #tpu.memory_space<vmem>>, vector<1x16x1xf32>,
    %123 = vector.extract_strided_slice %4 {offsets = [0, 24], sizes = [16, 8], strides = [1, 1]} : vector<16x32xbf16> to vector<16x8xbf16>
    %124 = vector.extract_strided_slice %6 {offsets = [0, 24], sizes = [16, 8], strides = [1, 1]} : vector<16x32xbf16> to vector<16x8xbf16>
    %125 = vector.extract_strided_slice %8 {offsets = [0, 24], sizes = [16, 8], strides = [1, 1]} : vector<16x32xbf16> to vector<16x8xbf16>
    "tpu.trace_start"() <{level = 10 : i32, message = "qd,kd->qk"}> : () -> ()
    %cst_75 = arith.constant dense<0.000000e+00> : vector<16x16xf32>
    %126 = tpu.matmul %123, %124, %cst_75 {dimension_numbers = #tpu.dot_dimension_numbers<[1], [1], [0], [0], [0, 0, 1, 0], [], []>} : vector<16x8xbf16>, vector<16x8xbf16>, vector<16x16xf32> -> vector<16x16xf32>
    "tpu.trace_stop"() : () -> ()
    %cst_76 = arith.constant 0.353553385 : f32
    %127 = vector.broadcast %cst_76 : f32 to vector<16x16xf32>
    %128 = arith.mulf %126, %127 : vector<16x16xf32>
    %c3 = arith.constant 3 : index
    %c0_77 = arith.constant 0 : index
    %c0_78 = arith.constant 0 : index
    %129 = vector.load %arg7[%c3, %c0_77, %c0_78] : memref<4x16x1xf32, #tpu.memory_space<vmem>>, vector<1x16x1xf32>
    %130 = vector.shape_cast %129 : vector<1x16x1xf32> to vector<16x1xf32>
    %cst_79 = arith.constant dense<0xFF800000> : vector<16xf32>
    %131 = vector.multi_reduction <maximumf>, %128, %cst_79 [1] : vector<16x16xf32> to vector<16xf32>
    %132 = vector.shape_cast %131 : vector<16xf32> to vector<16x1xf32>
    %133 = arith.maximumf %130, %132 : vector<16x1xf32>
    %134 = arith.subf %130, %133 : vector<16x1xf32>
    %135 = math.exp %134 : vector<16x1xf32>
    %136 = vector.broadcast %133 : vector<16x1xf32> to vector<16x16xf32>
    %137 = arith.subf %128, %136 : vector<16x16xf32>
    %138 = math.exp %137 : vector<16x16xf32>
    %c3_80 = arith.constant 3 : index
    %c0_81 = arith.constant 0 : index
    %c0_82 = arith.constant 0 : index
    %139 = vector.load %arg8[%c3_80, %c0_81, %c0_82] : memref<4x16x1xf32, #tpu.memory_space<vmem>>, vector<1x16x1xf32>
    %140 = vector.shape_cast %139 : vector<1x16x1xf32> to vector<16x1xf32>
    %141 = arith.mulf %135, %140 : vector<16x1xf32>
    %cst_83 = arith.constant dense<0.000000e+00> : vector<16xf32>
    %142 = vector.multi_reduction <add>, %138, %cst_83 [1] : vector<16x16xf32> to vector<16xf32>
    %143 = vector.shape_cast %142 : vector<16xf32> to vector<16x1xf32>
    %144 = arith.addf %141, %143 : vector<16x1xf32>
    %c3_84 = arith.constant 3 : index
    %c0_85 = arith.constant 0 : index
    %c0_86 = arith.constant 0 : index
    %145 = vector.load %arg8[%c3_84, %c0_85, %c0_86] : memref<4x16x1xf32, #tpu.memory_space<vmem>>, vector<1x16x1xf32>
    %146 = vector.shape_cast %145 : vector<1x16x1xf32> to vector<16x1xf32>
    %147 = vector.shape_cast %144 : vector<16x1xf32> to vector<1x16x1xf32>
    tpu.vector_store %arg8[%c3_84, %c0_85, %c0_86], %147 {strides = array<i32>} : memref<4x16x1xf32, #tpu.memory_space<vmem>>, vector<1x16x1xf32>,
    %c3_87 = arith.constant 3 : index
    %c0_88 = arith.constant 0 : index
    %c0_89 = arith.constant 0 : index
    %148 = vector.load %arg9[%c3_87, %c0_88, %c0_89] : memref<4x16x8xf32, #tpu.memory_space<vmem>>, vector<1x16x8xf32>
    %149 = vector.shape_cast %148 : vector<1x16x8xf32> to vector<16x8xf32>
    %150 = vector.broadcast %135 : vector<16x1xf32> to vector<16x8xf32>
    %151 = arith.mulf %150, %149 : vector<16x8xf32>
    %152 = arith.truncf %138 : vector<16x16xf32> to vector<16x16xbf16>
    %cst_90 = arith.constant dense<0.000000e+00> : vector<16x8xf32>
    %153 = tpu.matmul %152, %125, %cst_90 {dimension_numbers = #tpu.dot_dimension_numbers<[1], [0], [0], [1], [0, 0, 1, 1], [], []>} : vector<16x16xbf16>, vector<16x8xbf16>, vector<16x8xf32> -> vector<16x8xf32>
    %154 = arith.addf %151, %153 : vector<16x8xf32>
    %c3_91 = arith.constant 3 : index
    %c0_92 = arith.constant 0 : index
    %c0_93 = arith.constant 0 : index
    %155 = vector.load %arg9[%c3_91, %c0_92, %c0_93] : memref<4x16x8xf32, #tpu.memory_space<vmem>>, vector<1x16x8xf32>
    %156 = vector.shape_cast %155 : vector<1x16x8xf32> to vector<16x8xf32>
    %157 = vector.shape_cast %154 : vector<16x8xf32> to vector<1x16x8xf32>
    tpu.vector_store %arg9[%c3_91, %c0_92, %c0_93], %157 {strides = array<i32>} : memref<4x16x8xf32, #tpu.memory_space<vmem>>, vector<1x16x8xf32>,
    %c3_94 = arith.constant 3 : index
    %c0_95 = arith.constant 0 : index
    %c0_96 = arith.constant 0 : index
    %158 = vector.load %arg7[%c3_94, %c0_95, %c0_96] : memref<4x16x1xf32, #tpu.memory_space<vmem>>, vector<1x16x1xf32>
    %159 = vector.shape_cast %158 : vector<1x16x1xf32> to vector<16x1xf32>
    %160 = vector.shape_cast %133 : vector<16x1xf32> to vector<1x16x1xf32>
    tpu.vector_store %arg7[%c3_94, %c0_95, %c0_96], %160 {strides = array<i32>} : memref<4x16x1xf32, #tpu.memory_space<vmem>>, vector<1x16x1xf32>,
    %c0_i32_97 = arith.constant 0 : i32
    %161 = arith.cmpi eq, %arg2, %c0_i32_97 : i32
    %162 = arith.extui %161 : i1 to i32
    %c0_i32_98 = arith.constant 0 : i32
    %163 = arith.cmpi ne, %162, %c0_i32_98 : i32
    scf.if %163 {
      %c0_99 = arith.constant 0 : index
      %c0_100 = arith.constant 0 : index
      %c0_101 = arith.constant 0 : index
      %164 = vector.load %arg8[%c0_99, %c0_100, %c0_101] : memref<4x16x1xf32, #tpu.memory_space<vmem>>, vector<1x16x1xf32>
      %165 = vector.shape_cast %164 : vector<1x16x1xf32> to vector<16x1xf32>
      %166 = tpu.reciprocal %165 {approx = true} : vector<16x1xf32> -> vector<16x1xf32>
      %c0_102 = arith.constant 0 : index
      %c0_103 = arith.constant 0 : index
      %c0_104 = arith.constant 0 : index
      %167 = vector.load %arg9[%c0_102, %c0_103, %c0_104] : memref<4x16x8xf32, #tpu.memory_space<vmem>>, vector<1x16x8xf32>
      %168 = vector.shape_cast %167 : vector<1x16x8xf32> to vector<16x8xf32>
      %169 = vector.broadcast %166 : vector<16x1xf32> to vector<16x8xf32>
      %170 = arith.mulf %168, %169 : vector<16x8xf32>
      %c1_105 = arith.constant 1 : index
      %c0_106 = arith.constant 0 : index
      %c0_107 = arith.constant 0 : index
      %171 = vector.load %arg8[%c1_105, %c0_106, %c0_107] : memref<4x16x1xf32, #tpu.memory_space<vmem>>, vector<1x16x1xf32>
      %172 = vector.shape_cast %171 : vector<1x16x1xf32> to vector<16x1xf32>
      %173 = tpu.reciprocal %172 {approx = true} : vector<16x1xf32> -> vector<16x1xf32>
      %c1_108 = arith.constant 1 : index
      %c0_109 = arith.constant 0 : index
      %c0_110 = arith.constant 0 : index
      %174 = vector.load %arg9[%c1_108, %c0_109, %c0_110] : memref<4x16x8xf32, #tpu.memory_space<vmem>>, vector<1x16x8xf32>
      %175 = vector.shape_cast %174 : vector<1x16x8xf32> to vector<16x8xf32>
      %176 = vector.broadcast %173 : vector<16x1xf32> to vector<16x8xf32>
      %177 = arith.mulf %175, %176 : vector<16x8xf32>
      %c2_111 = arith.constant 2 : index
      %c0_112 = arith.constant 0 : index
      %c0_113 = arith.constant 0 : index
      %178 = vector.load %arg8[%c2_111, %c0_112, %c0_113] : memref<4x16x1xf32, #tpu.memory_space<vmem>>, vector<1x16x1xf32>
      %179 = vector.shape_cast %178 : vector<1x16x1xf32> to vector<16x1xf32>
      %180 = tpu.reciprocal %179 {approx = true} : vector<16x1xf32> -> vector<16x1xf32>
      %c2_114 = arith.constant 2 : index
      %c0_115 = arith.constant 0 : index
      %c0_116 = arith.constant 0 : index
      %181 = vector.load %arg9[%c2_114, %c0_115, %c0_116] : memref<4x16x8xf32, #tpu.memory_space<vmem>>, vector<1x16x8xf32>
      %182 = vector.shape_cast %181 : vector<1x16x8xf32> to vector<16x8xf32>
      %183 = vector.broadcast %180 : vector<16x1xf32> to vector<16x8xf32>
      %184 = arith.mulf %182, %183 : vector<16x8xf32>
      %c3_117 = arith.constant 3 : index
      %c0_118 = arith.constant 0 : index
      %c0_119 = arith.constant 0 : index
      %185 = vector.load %arg8[%c3_117, %c0_118, %c0_119] : memref<4x16x1xf32, #tpu.memory_space<vmem>>, vector<1x16x1xf32>
      %186 = vector.shape_cast %185 : vector<1x16x1xf32> to vector<16x1xf32>
      %187 = tpu.reciprocal %186 {approx = true} : vector<16x1xf32> -> vector<16x1xf32>
      %c3_120 = arith.constant 3 : index
      %c0_121 = arith.constant 0 : index
      %c0_122 = arith.constant 0 : index
      %188 = vector.load %arg9[%c3_120, %c0_121, %c0_122] : memref<4x16x8xf32, #tpu.memory_space<vmem>>, vector<1x16x8xf32>
      %189 = vector.shape_cast %188 : vector<1x16x8xf32> to vector<16x8xf32>
      %190 = vector.broadcast %187 : vector<16x1xf32> to vector<16x8xf32>
      %191 = arith.mulf %189, %190 : vector<16x8xf32>
      %192 = tpu.concatenate %170, %177, %184, %191 in 1 : vector<16x8xf32>, vector<16x8xf32>, vector<16x8xf32>, vector<16x8xf32> -> vector<16x32xf32>
      %193 = arith.truncf %192 : vector<16x32xf32> to vector<16x32xbf16>
      %c0_123 = arith.constant 0 : index
      %c0_124 = arith.constant 0 : index
      %c0_125 = arith.constant 0 : index
      %194 = vector.load %arg6[%c0_123, %c0_124, %c0_125] : memref<1x16x32xbf16, #tpu.memory_space<vmem>>, vector<1x16x32xbf16>
      %195 = vector.shape_cast %194 : vector<1x16x32xbf16> to vector<16x32xbf16>
      %196 = vector.shape_cast %193 : vector<16x32xbf16> to vector<1x16x32xbf16>
      tpu.vector_store %arg6[%c0_123, %c0_124, %c0_125], %196 {strides = array<i32>} : memref<1x16x32xbf16, #tpu.memory_space<vmem>>, vector<1x16x32xbf16>,
    } else {
    }
    return
  }
  func.func @transform_0(%arg0: i32, %arg1: i32, %arg2: i32) -> (i32, i32, i32) {
    %c0_i32 = arith.constant 0 : i32
    %c0_i32_0 = arith.constant 0 : i32
    return %arg0, %arg1, %c0_i32 : i32, i32, i32
  }
  func.func @transform_1(%arg0: i32, %arg1: i32, %arg2: i32) -> (i32, i32, i32) {
    %c0_i32 = arith.constant 0 : i32
    %c0_i32_0 = arith.constant 0 : i32
    return %arg0, %arg2, %c0_i32 : i32, i32, i32
  }
  func.func @transform_2(%arg0: i32, %arg1: i32, %arg2: i32) -> (i32, i32, i32) {
    %c0_i32 = arith.constant 0 : i32
    %c0_i32_0 = arith.constant 0 : i32
    return %arg0, %arg2, %c0_i32 : i32, i32, i32
  }
  func.func @transform_3(%arg0: i32, %arg1: i32, %arg2: i32) -> (i32, i32, i32) {
    %c0_i32 = arith.constant 0 : i32
    %c0_i32_0 = arith.constant 0 : i32
    return %arg0, %arg1, %c0_i32 : i32, i32, i32
  }
}

module attributes {stable_mosaic.version = 11 : i64} {
  func.func @_linear_kernel(%arg0: i32, %arg1: i32, %arg2: i32, %arg3: memref<32x32xbf16, #tpu.memory_space<vmem>>, %arg4: memref<32x32xbf16, #tpu.memory_space<vmem>>, %arg5: memref<1x32xf32, #tpu.memory_space<vmem>>, %arg6: memref<32x32xf32, #tpu.memory_space<vmem>>, %arg7: memref<32x32xf32, #tpu.memory_space<vmem>>) attributes {dimension_semantics = [#tpu.dimension_semantics<parallel>, #tpu.dimension_semantics<parallel>, #tpu.dimension_semantics<arbitrary>], iteration_bounds = array<i64: 1, 1, 1>, scalar_prefetch = 0 : i64, scratch_operands = 1 : i64, tpu.core_type = #tpu.core_type<tc>, window_params = [{transform_indices = @transform_0, window_bounds = array<i64: 32, 32>}, {transform_indices = @transform_1, window_bounds = array<i64: 32, 32>}, {transform_indices = @transform_2, window_bounds = array<i64: 1, 32>}, {transform_indices = @transform_3, window_bounds = array<i64: 32, 32>}]} {
    %c0_i32 = arith.constant 0 : i32
    %0 = arith.cmpi eq, %arg2, %c0_i32 : i32
    %1 = arith.extui %0 : i1 to i32
    %c0_i32_0 = arith.constant 0 : i32
    %2 = arith.cmpi ne, %1, %c0_i32_0 : i32
    scf.if %2 {
      %cst_10 = arith.constant 0.000000e+00 : f32
      %12 = vector.broadcast %cst_10 : f32 to vector<32x32xf32>
      %c0_11 = arith.constant 0 : index
      %c0_12 = arith.constant 0 : index
      %13 = vector.load %arg7[%c0_11, %c0_12] : memref<32x32xf32, #tpu.memory_space<vmem>>, vector<32x32xf32>
      tpu.vector_store %arg7[%c0_11, %c0_12], %12 {strides = array<i32>} : memref<32x32xf32, #tpu.memory_space<vmem>>, vector<32x32xf32>,
    } else {
    }
    %c0 = arith.constant 0 : index
    %c0_1 = arith.constant 0 : index
    %3 = vector.load %arg7[%c0, %c0_1] : memref<32x32xf32, #tpu.memory_space<vmem>>, vector<32x32xf32>
    %c0_2 = arith.constant 0 : index
    %c0_3 = arith.constant 0 : index
    %4 = vector.load %arg3[%c0_2, %c0_3] : memref<32x32xbf16, #tpu.memory_space<vmem>>, vector<32x32xbf16>
    %c0_4 = arith.constant 0 : index
    %c0_5 = arith.constant 0 : index
    %5 = vector.load %arg4[%c0_4, %c0_5] : memref<32x32xbf16, #tpu.memory_space<vmem>>, vector<32x32xbf16>
    %cst = arith.constant dense<0.000000e+00> : vector<32x32xf32>
    %6 = tpu.matmul %4, %5, %cst {dimension_numbers = #tpu.dot_dimension_numbers<[1], [0], [0], [1], [0, 0, 1, 1], [], []>} : vector<32x32xbf16>, vector<32x32xbf16>, vector<32x32xf32> -> vector<32x32xf32>
    %7 = arith.addf %3, %6 : vector<32x32xf32>
    %c0_6 = arith.constant 0 : index
    %c0_7 = arith.constant 0 : index
    %8 = vector.load %arg7[%c0_6, %c0_7] : memref<32x32xf32, #tpu.memory_space<vmem>>, vector<32x32xf32>
    tpu.vector_store %arg7[%c0_6, %c0_7], %7 {strides = array<i32>} : memref<32x32xf32, #tpu.memory_space<vmem>>, vector<32x32xf32>,
    %c0_i32_8 = arith.constant 0 : i32
    %9 = arith.cmpi eq, %arg2, %c0_i32_8 : i32
    %10 = arith.extui %9 : i1 to i32
    %c0_i32_9 = arith.constant 0 : i32
    %11 = arith.cmpi ne, %10, %c0_i32_9 : i32
    scf.if %11 {
      %c0_10 = arith.constant 0 : index
      %c0_11 = arith.constant 0 : index
      %12 = vector.load %arg7[%c0_10, %c0_11] : memref<32x32xf32, #tpu.memory_space<vmem>>, vector<32x32xf32>
      %c0_12 = arith.constant 0 : index
      %c0_13 = arith.constant 0 : index
      %13 = vector.load %arg5[%c0_12, %c0_13] : memref<1x32xf32, #tpu.memory_space<vmem>>, vector<1x32xf32>
      %14 = vector.broadcast %13 : vector<1x32xf32> to vector<32x32xf32>
      %15 = arith.addf %12, %14 : vector<32x32xf32>
      %c0_14 = arith.constant 0 : index
      %c0_15 = arith.constant 0 : index
      %16 = vector.load %arg6[%c0_14, %c0_15] : memref<32x32xf32, #tpu.memory_space<vmem>>, vector<32x32xf32>
      tpu.vector_store %arg6[%c0_14, %c0_15], %15 {strides = array<i32>} : memref<32x32xf32, #tpu.memory_space<vmem>>, vector<32x32xf32>,
    } else {
    }
    return
  }
  func.func @transform_0(%arg0: i32, %arg1: i32, %arg2: i32) -> (i32, i32) {
    %c0_i32 = arith.constant 0 : i32
    return %arg0, %arg2 : i32, i32
  }
  func.func @transform_1(%arg0: i32, %arg1: i32, %arg2: i32) -> (i32, i32) {
    %c0_i32 = arith.constant 0 : i32
    return %arg2, %arg1 : i32, i32
  }
  func.func @transform_2(%arg0: i32, %arg1: i32, %arg2: i32) -> (i32, i32) {
    %c0_i32 = arith.constant 0 : i32
    %c0_i32_0 = arith.constant 0 : i32
    return %c0_i32, %arg1 : i32, i32
  }
  func.func @transform_3(%arg0: i32, %arg1: i32, %arg2: i32) -> (i32, i32) {
    %c0_i32 = arith.constant 0 : i32
    return %arg0, %arg1 : i32, i32
  }
}

</mosaic_0001>

<llo_original>
// kernel: _lambda_.3
$region0: #{_lambda_.3}
  #allocation0 [shape = 'u32[]', space=smem, size = 0x4, offset = 0x4, fixed_abs, tag = 'smem constant byte address 0x4 - core index']
  #allocation1 [shape = 'u32[144,128]{1,0:T(1,128)}', space=vmem, size = 0x12000, scoped, tag = 'internal scratch']
  #allocation2 [shape = 'f32[32,96]{1,0:T(8,128)}', space=vmem, size = 0x4000, scoped, tag = 'scratch operand']
  %s0 = inlined_call_operand.vmem [shape: bf16[32,32], index: 0, kind: input, shape index: {}]
  %s1 = inlined_call_operand.vmem [shape: bf16[32,96], index: 1, kind: input, shape index: {}]
  %s2 = inlined_call_operand.vmem [shape: f32[1,96], index: 2, kind: input, shape index: {}]
  %s3 = inlined_call_operand.vmem [shape: bf16[32,96], index: 3, kind: output, shape index: {}]
  %s4 = sld [smem:[#allocation0]]
  $region30: #{_lambda_.3} parent=0
    _
  %s6 = ssub.s32 1, %s4
  %s7 = scalar_select 0, %s6, %s4
  // Predicated region
  $region2: #{_lambda_.3} parent=0 // pred_check
    _
  $region3: #{_lambda_.3} parent=0 // pred_check_branch
    %9 = sbr.rel (0) target = $region5
  $region4: #{_lambda_.3} parent=0 // pred_region
    _
  $region5: #{_lambda_.3} parent=0 // pred_fallthru
    _
  // Predicated region
  $region6: #{_lambda_.3} parent=0 // pred_check
    _
  $region7: #{_lambda_.3} parent=0 // pred_check_branch
    %11 = sbr.rel (0) target = $region9
  $region8: #{_lambda_.3} parent=0 // pred_region
    _
  $region9: #{_lambda_.3} parent=0 // pred_fallthru
    _
  // Predicated region
  $region10: #{_lambda_.3} parent=0 // pred_check
    _
  $region11: #{_lambda_.3} parent=0 // pred_check_branch
    %13 = sbr.rel (0) target = $region13
  $region12: #{_lambda_.3} parent=0 // pred_region
    _
  $region13: #{_lambda_.3} parent=0 // pred_fallthru
    _
  %p15 = scmp.eq.s32.totalorder 0, 0
  // Predicated region
  $region14: #{_lambda_.3} parent=0 // pred_check
    %p16 = pneg %p15
  $region15: #{_lambda_.3} parent=0 // pred_check_branch
    %18 = sbr.rel (%p16) target = $region17
  $region16: #{_lambda_.3} parent=0 // pred_region
    %vm19 = vcmask 785408
    %20 = vst.msk [vmem:[#allocation2] sm:$0xff] %vm19, 0.0
    %21 = vst.msk [vmem:[#allocation2 + $0x8] sm:$0xff] %vm19, 0.0
    %22 = vst.msk [vmem:[#allocation2 + $0x10] sm:$0xff] %vm19, 0.0
    %23 = vst.msk [vmem:[#allocation2 + $0x18] sm:$0xff] %vm19, 0.0
  $region17: #{_lambda_.3} parent=0 // pred_fallthru
    _
  %v24 = vld [vmem:[#allocation2] sm:$0xff]
  %v25 = vld [vmem:[#allocation2 + $0x8] sm:$0xff]
  %v26 = vld [vmem:[#allocation2 + $0x10] sm:$0xff]
  %v27 = vld [vmem:[#allocation2 + $0x18] sm:$0xff]
  %v28 = vld [vmem:[%s0] sm:$0xf]
  %v29 = vld [vmem:[%s0 + $0x4] sm:$0xf]
  %v30 = vld [vmem:[%s0 + $0x8] sm:$0xf]
  %v31 = vld [vmem:[%s0 + $0xc] sm:$0xf]
  %v32 = vld [vmem:[%s1] sm:$0xf]
  %v33 = vld [vmem:[%s1 + $0x4] sm:$0xf]
  %v34 = vld [vmem:[%s1 + $0x8] sm:$0xf]
  %v35 = vld [vmem:[%s1 + $0xc] sm:$0xf]
  %v40 = vunpack.c.l.b16 %v28
  %v41 = vunpack.c.l.b16 %v29
  %v42 = vunpack.c.l.b16 %v30
  %v43 = vunpack.c.l.b16 %v31
  %v44 = vpack.c.b16 %v41, %v40
  %v45 = vpack.c.b16 %v43, %v42
  %v50 = vunpack.c.l.b16 %v32
  %v51 = vunpack.c.l.b16 %v33
  %v52 = vunpack.c.l.b16 %v34
  %v53 = vunpack.c.l.b16 %v35
  %v54 = vpack.c.b16 %v51, %v50
  %v55 = vpack.c.b16 %v53, %v52
  %vm58 = vcmask 261120
  %v60 = vsel %vm58, %v44, 0
  %v63 = vsel %vm58, %v45, 0
  %65 = vmatprep.subr.bf16.mxu0 0
  %66 = vmatpush1.bf16.msra.mxu0 0
  %67 = vmatprep.subr.bf16.mxu0 0
  %68 = vmatpush1.bf16.msra.mxu0 0
  %69 = vmatprep.subr.bf16.mxu0 0
  %70 = vmatpush1.bf16.msra.mxu0 0
  %71 = vmatprep.subr.bf16.mxu0 0
  %72 = vmatpush1.bf16.msra.mxu0 0
  %73 = vmatprep.subr.bf16.mxu0 0
  %74 = vmatpush1.bf16.msra.mxu0 0
  %75 = vmatprep.subr.bf16.mxu0 0
  %76 = vmatpush1.bf16.msra.mxu0 0
  %77 = vmatprep.subr.bf16.mxu0 0
  %78 = vmatpush1.bf16.msra.mxu0 %v55
  %79 = vmatprep.subr.bf16.mxu0 0
  %80 = vmatpush1.bf16.msra.mxu0 %v54
  %81 = vmatprep.subr.bf16.mxu0 0
  %82 = vmatpush2.bf16.msra.mxu0 0
  %83 = vmatprep.subr.bf16.mxu0 0
  %84 = vmatpush2.bf16.msra.mxu0 0
  %85 = vmatprep.subr.bf16.mxu0 0
  %86 = vmatpush2.bf16.msra.mxu0 0
  %87 = vmatprep.subr.bf16.mxu0 0
  %88 = vmatpush2.bf16.msra.mxu0 0
  %89 = vmatprep.subr.bf16.mxu0 0
  %90 = vmatpush2.bf16.msra.mxu0 0
  %91 = vmatprep.subr.bf16.mxu0 0
  %92 = vmatpush2.bf16.msra.mxu0 0
  %93 = vmatprep.subr.bf16.mxu0 0
  %94 = vmatpush2.bf16.msra.mxu0 0
  %95 = vmatprep.subr.bf16.mxu0 0
  %96 = vmatpush2.bf16.msra.mxu0 0
  %97 = vmatprep.mubr.bf16.mxu0 0
  %98 = vmatmul.mubr.bf16.gmra.mxu0 %v60
  %v99 = vpop.f32.mrf.mxu0
  %v100 = vadd.f32 0.0, %v99
  %v101 = vpop.f32.mrf.mxu0
  %v102 = vpop.f32.mrf.mxu0
  %v103 = vadd.f32 0.0, %v102
  %v104 = vpop.f32.mrf.mxu0
  %105 = vmatprep.mubr.bf16.mxu0 0
  %106 = vmatmul.mubr.bf16.gmra.mxu0 %v63
  %v107 = vpop.f32.mrf.mxu0
  %v108 = vadd.f32 0.0, %v107
  %v109 = vpop.f32.mrf.mxu0
  %v110 = vpop.f32.mrf.mxu0
  %v111 = vadd.f32 0.0, %v110
  %v112 = vpop.f32.mrf.mxu0
  %113 = vdwg.mxu0
  %v114 = vadd.f32 %v24, %v100
  %v115 = vadd.f32 %v25, %v103
  %v116 = vadd.f32 %v26, %v108
  %v117 = vadd.f32 %v27, %v111
  %vm118 = vcmask 785408
  %119 = vst.msk [vmem:[#allocation2] sm:$0xff] %vm118, %v114
  %120 = vst.msk [vmem:[#allocation2 + $0x8] sm:$0xff] %vm118, %v115
  %121 = vst.msk [vmem:[#allocation2 + $0x10] sm:$0xff] %vm118, %v116
  %122 = vst.msk [vmem:[#allocation2 + $0x18] sm:$0xff] %vm118, %v117
  // Predicated region
  $region18: #{_lambda_.3} parent=0 // pred_check
    %p123 = pneg %p15
  $region19: #{_lambda_.3} parent=0 // pred_check_branch
    %125 = sbr.rel (%p123) target = $region21
  $region20: #{_lambda_.3} parent=0 // pred_region
    %v126 = vld [vmem:[#allocation2] sm:$0xff]
    %v127 = vld [vmem:[#allocation2 + $0x8] sm:$0xff]
    %v128 = vld [vmem:[#allocation2 + $0x10] sm:$0xff]
    %v129 = vld [vmem:[#allocation2 + $0x18] sm:$0xff]
    %v130 = vld [vmem:[%s2] sm:$0x1]
    %v132 = vlaneseq
    %v133 = vshrl.u32 %v132, 7
    %v134 = vsub.s32 0, %v133
    %v135 = vrot.slane %v130, %v134
    %v137 = vadd.f32 %v126, %v135
    %v138 = vadd.f32 %v127, %v135
    %v139 = vadd.f32 %v128, %v135
    %v140 = vadd.f32 %v129, %v135
    %v141 = vpack.c.bf16 %v138, %v137
    %v142 = vpack.c.bf16 %v140, %v139
    %v145 = vunpack.c.l.b16 %v141
    %v146 = vunpack.c.h.b16 %v141
    %v147 = vunpack.c.l.b16 %v142
    %v148 = vunpack.c.h.b16 %v142
    %v149 = vpack.c.b16 %v145, %v145
    %v150 = vpack.c.b16 %v146, %v146
    %v151 = vpack.c.b16 %v147, %v147
    %v152 = vpack.c.b16 %v148, %v148
    %vm157 = vcmask 781312
    %158 = vst.msk [vmem:[%s3] sm:$0xf] %vm157, %v149
    %159 = vst.msk [vmem:[%s3 + $0x4] sm:$0xf] %vm157, %v150
    %160 = vst.msk [vmem:[%s3 + $0x8] sm:$0xf] %vm157, %v151
    %161 = vst.msk [vmem:[%s3 + $0xc] sm:$0xf] %vm157, %v152
  $region21: #{_lambda_.3} parent=0 // pred_fallthru
    _
  // Predicated region
  $region22: #{_lambda_.3} parent=0 // pred_check
    _
  $region23: #{_lambda_.3} parent=0 // pred_check_branch
    %163 = sbr.rel (0) target = $region25
  $region24: #{_lambda_.3} parent=0 // pred_region
    _
  $region25: #{_lambda_.3} parent=0 // pred_fallthru
    _
  // Predicated region
  $region26: #{_lambda_.3} parent=0 // pred_check
    _
  $region27: #{_lambda_.3} parent=0 // pred_check_branch
    %165 = sbr.rel (0) target = $region29
  $region28: #{_lambda_.3} parent=0 // pred_region
    _
  $region29: #{_lambda_.3} parent=0 // pred_fallthru
    _

// kernel: _lambda_.5
$region0: #{_lambda_.5}
  #allocation0 [shape = 'u32[]', space=smem, size = 0x4, offset = 0x4, fixed_abs, tag = 'smem constant byte address 0x4 - core index']
  #allocation1 [shape = 'u32[144,128]{1,0:T(1,128)}', space=vmem, size = 0x12000, scoped, tag = 'internal scratch']
  #allocation2 [shape = 'f32[32,32]{1,0:T(8,128)}', space=vmem, size = 0x4000, scoped, tag = 'scratch operand']
  %s0 = inlined_call_operand.vmem [shape: bf16[32,32], index: 0, kind: input, shape index: {}]
  %s1 = inlined_call_operand.vmem [shape: bf16[32,32], index: 1, kind: input, shape index: {}]
  %s2 = inlined_call_operand.vmem [shape: f32[1,32], index: 2, kind: input, shape index: {}]
  %s3 = inlined_call_operand.hbm [shape: f32[32,32], index: 3, kind: output, shape index: {}]
  %s4 = sld [smem:[#allocation0]]
  $region30: #{_lambda_.5} parent=0
    _
  %s6 = ssub.s32 1, %s4
  %s7 = scalar_select 0, %s6, %s4
  $region1: #{_lambda_.5} parent=0
    #allocation3 [shape = 'u8[16384]{0}', space=vmem, size = 0x4000, scoped, tag = 'output window, operand 0, single buffered']
    #allocation4 [shape = 's32[1]{0}', space=sflag, size = 0x4, scoped, tag = 'scoped memory for _lambda_.5']
    %8 = vsyncpa [#allocation4], 0
    // Predicated region
    $region2: #{_lambda_.5} parent=1 // pred_check
      _
    $region3: #{_lambda_.5} parent=1 // pred_check_branch
      %10 = sbr.rel (0) target = $region5
    $region4: #{_lambda_.5} parent=1 // pred_region
      _
    $region5: #{_lambda_.5} parent=1 // pred_fallthru
      _
    // Predicated region
    $region6: #{_lambda_.5} parent=1 // pred_check
      _
    $region7: #{_lambda_.5} parent=1 // pred_check_branch
      %12 = sbr.rel (0) target = $region9
    $region8: #{_lambda_.5} parent=1 // pred_region
      _
    $region9: #{_lambda_.5} parent=1 // pred_fallthru
      _
    // Predicated region
    $region10: #{_lambda_.5} parent=1 // pred_check
      _
    $region11: #{_lambda_.5} parent=1 // pred_check_branch
      %14 = sbr.rel (0) target = $region13
    $region12: #{_lambda_.5} parent=1 // pred_region
      _
    $region13: #{_lambda_.5} parent=1 // pred_fallthru
      _
    %p16 = scmp.eq.s32.totalorder 0, 0
    // Predicated region
    $region14: #{_lambda_.5} parent=1 // pred_check
      %p17 = pneg %p16
    $region15: #{_lambda_.5} parent=1 // pred_check_branch
      %19 = sbr.rel (%p17) target = $region17
    $region16: #{_lambda_.5} parent=1 // pred_region
      %vm20 = vcmask 261120
      %21 = vst.msk [vmem:[#allocation2] sm:$0xff] %vm20, 0.0
      %22 = vst.msk [vmem:[#allocation2 + $0x8] sm:$0xff] %vm20, 0.0
      %23 = vst.msk [vmem:[#allocation2 + $0x10] sm:$0xff] %vm20, 0.0
      %24 = vst.msk [vmem:[#allocation2 + $0x18] sm:$0xff] %vm20, 0.0
    $region17: #{_lambda_.5} parent=1 // pred_fallthru
      _
    %v25 = vld [vmem:[#allocation2] sm:$0xff]
    %v26 = vld [vmem:[#allocation2 + $0x8] sm:$0xff]
    %v27 = vld [vmem:[#allocation2 + $0x10] sm:$0xff]
    %v28 = vld [vmem:[#allocation2 + $0x18] sm:$0xff]
    %v29 = vld [vmem:[%s0] sm:$0xf]
    %v30 = vld [vmem:[%s0 + $0x4] sm:$0xf]
    %v31 = vld [vmem:[%s0 + $0x8] sm:$0xf]
    %v32 = vld [vmem:[%s0 + $0xc] sm:$0xf]
    %v33 = vld [vmem:[%s1] sm:$0xf]
    %v34 = vld [vmem:[%s1 + $0x4] sm:$0xf]
    %v35 = vld [vmem:[%s1 + $0x8] sm:$0xf]
    %v36 = vld [vmem:[%s1 + $0xc] sm:$0xf]
    %v41 = vunpack.c.l.b16 %v29
    %v42 = vunpack.c.l.b16 %v30
    %v43 = vunpack.c.l.b16 %v31
    %v44 = vunpack.c.l.b16 %v32
    %v45 = vpack.c.b16 %v42, %v41
    %v46 = vpack.c.b16 %v44, %v43
    %v51 = vunpack.c.l.b16 %v33
    %v52 = vunpack.c.l.b16 %v34
    %v53 = vunpack.c.l.b16 %v35
    %v54 = vunpack.c.l.b16 %v36
    %v55 = vpack.c.b16 %v52, %v51
    %v56 = vpack.c.b16 %v54, %v53
    %vm59 = vcmask 261120
    %v61 = vsel %vm59, %v45, 0
    %v64 = vsel %vm59, %v46, 0
    %66 = vmatprep.subr.bf16.mxu0 0
    %67 = vmatpush1.bf16.msra.mxu0 0
    %68 = vmatprep.subr.bf16.mxu0 0
    %69 = vmatpush1.bf16.msra.mxu0 0
    %70 = vmatprep.subr.bf16.mxu0 0
    %71 = vmatpush1.bf16.msra.mxu0 0
    %72 = vmatprep.subr.bf16.mxu0 0
    %73 = vmatpush1.bf16.msra.mxu0 0
    %74 = vmatprep.subr.bf16.mxu0 0
    %75 = vmatpush1.bf16.msra.mxu0 0
    %76 = vmatprep.subr.bf16.mxu0 0
    %77 = vmatpush1.bf16.msra.mxu0 0
    %78 = vmatprep.subr.bf16.mxu0 0
    %79 = vmatpush1.bf16.msra.mxu0 %v56
    %80 = vmatprep.subr.bf16.mxu0 0
    %81 = vmatpush1.bf16.msra.mxu0 %v55
    %82 = vmatprep.subr.bf16.mxu0 0
    %83 = vmatpush2.bf16.msra.mxu0 0
    %84 = vmatprep.subr.bf16.mxu0 0
    %85 = vmatpush2.bf16.msra.mxu0 0
    %86 = vmatprep.subr.bf16.mxu0 0
    %87 = vmatpush2.bf16.msra.mxu0 0
    %88 = vmatprep.subr.bf16.mxu0 0
    %89 = vmatpush2.bf16.msra.mxu0 0
    %90 = vmatprep.subr.bf16.mxu0 0
    %91 = vmatpush2.bf16.msra.mxu0 0
    %92 = vmatprep.subr.bf16.mxu0 0
    %93 = vmatpush2.bf16.msra.mxu0 0
    %94 = vmatprep.subr.bf16.mxu0 0
    %95 = vmatpush2.bf16.msra.mxu0 0
    %96 = vmatprep.subr.bf16.mxu0 0
    %97 = vmatpush2.bf16.msra.mxu0 0
    %98 = vmatprep.mubr.bf16.mxu0 0
    %99 = vmatmul.mubr.bf16.gmra.mxu0 %v61
    %v100 = vpop.f32.mrf.mxu0
    %v101 = vadd.f32 0.0, %v100
    %v102 = vpop.f32.mrf.mxu0
    %v103 = vpop.f32.mrf.mxu0
    %v104 = vadd.f32 0.0, %v103
    %v105 = vpop.f32.mrf.mxu0
    %106 = vmatprep.mubr.bf16.mxu0 0
    %107 = vmatmul.mubr.bf16.gmra.mxu0 %v64
    %v108 = vpop.f32.mrf.mxu0
    %v109 = vadd.f32 0.0, %v108
    %v110 = vpop.f32.mrf.mxu0
    %v111 = vpop.f32.mrf.mxu0
    %v112 = vadd.f32 0.0, %v111
    %v113 = vpop.f32.mrf.mxu0
    %114 = vdwg.mxu0
    %v115 = vadd.f32 %v25, %v101
    %v116 = vadd.f32 %v26, %v104
    %v117 = vadd.f32 %v27, %v109
    %v118 = vadd.f32 %v28, %v112
    %119 = vst.msk [vmem:[#allocation2] sm:$0xff] %vm59, %v115
    %120 = vst.msk [vmem:[#allocation2 + $0x8] sm:$0xff] %vm59, %v116
    %121 = vst.msk [vmem:[#allocation2 + $0x10] sm:$0xff] %vm59, %v117
    %122 = vst.msk [vmem:[#allocation2 + $0x18] sm:$0xff] %vm59, %v118
    // Predicated region
    $region18: #{_lambda_.5} parent=1 // pred_check
      %p123 = pneg %p16
    $region19: #{_lambda_.5} parent=1 // pred_check_branch
      %125 = sbr.rel (%p123) target = $region21
    $region20: #{_lambda_.5} parent=1 // pred_region
      %v126 = vld [vmem:[#allocation2] sm:$0xff]
      %v127 = vld [vmem:[#allocation2 + $0x8] sm:$0xff]
      %v128 = vld [vmem:[#allocation2 + $0x10] sm:$0xff]
      %v129 = vld [vmem:[#allocation2 + $0x18] sm:$0xff]
      %v130 = vld [vmem:[%s2] sm:$0x1]
      %v132 = vlaneseq
      %v133 = vshrl.u32 %v132, 7
      %v134 = vsub.s32 0, %v133
      %v135 = vrot.slane %v130, %v134
      %v137 = vadd.f32 %v126, %v135
      %v138 = vadd.f32 %v127, %v135
      %v139 = vadd.f32 %v128, %v135
      %v140 = vadd.f32 %v129, %v135
      %141 = vst.msk [vmem:[#allocation3] sm:$0xff] %vm59, %v137
      %142 = vst.msk [vmem:[#allocation3 + $0x8] sm:$0xff] %vm59, %v138
      %143 = vst.msk [vmem:[#allocation3 + $0x10] sm:$0xff] %vm59, %v139
      %144 = vst.msk [vmem:[#allocation3 + $0x18] sm:$0xff] %vm59, %v140
    $region21: #{_lambda_.5} parent=1 // pred_fallthru
      _
    // Predicated region
    $region22: #{_lambda_.5} parent=1 // pred_check
      _
    $region23: #{_lambda_.5} parent=1 // pred_check_branch
      %146 = sbr.rel (0) target = $region25
    $region24: #{_lambda_.5} parent=1 // pred_region
      %s148 = ssub.s32 512, 512
      %149 = vsyncadd [#allocation4], %s148
      %s150 = sshll.u32 [#allocation3], 4
      %s151 = int_to_ptr.vmem [resolvable:$true] %s150
      %156 = dma.vmem_to_hbm [thread:$0]  %s151, 512, %s3, [#allocation4], 128, 128, 8
    $region25: #{_lambda_.5} parent=1 // pred_fallthru
      _
    // Predicated region
    $region26: #{_lambda_.5} parent=1 // pred_check
      _
    $region27: #{_lambda_.5} parent=1 // pred_check_branch
      %158 = sbr.rel (0) target = $region29
    $region28: #{_lambda_.5} parent=1 // pred_region
      %159 = dma.done [#allocation4], 512
    $region29: #{_lambda_.5} parent=1 // pred_fallthru
      _
    %160 = vsyncpa [#allocation4], 1

// kernel: _lambda_.4
$region0: #{_lambda_.4}
  #allocation0 [shape = 'u32[]', space=smem, size = 0x4, offset = 0x4, fixed_abs, tag = 'smem constant byte address 0x4 - core index']
  #allocation1 [shape = 'u32[144,128]{1,0:T(1,128)}', space=vmem, size = 0x12000, scoped, tag = 'internal scratch']
  #allocation2 [shape = 'f32[4,16,1]{2,1,0:T(8,128)}', space=vmem, size = 0x8000, scoped, tag = 'scratch operand']
  #allocation3 [shape = 'f32[4,16,1]{2,1,0:T(8,128)}', space=vmem, size = 0x8000, scoped, tag = 'scratch operand']
  #allocation4 [shape = 'f32[4,16,8]{2,1,0:T(8,128)}', space=vmem, size = 0x8000, scoped, tag = 'scratch operand']
  %s0 = inlined_call_operand.vmem [shape: bf16[2,16,32], index: 0, kind: input, shape index: {}]
  %s1 = inlined_call_operand.vmem [shape: bf16[2,16,32], index: 1, kind: input, shape index: {}]
  %s2 = inlined_call_operand.vmem [shape: bf16[2,16,32], index: 2, kind: input, shape index: {}]
  %s3 = inlined_call_operand.vmem [shape: bf16[2,16,32], index: 3, kind: output, shape index: {}]
  %s4 = sld [smem:[#allocation0]]
  $region53: #{_lambda_.4} parent=0
    _
  %s6 = ssub.s32 1, %s4
  %s7 = scalar_select 0, %s6, %s4
  loop: start=0, step=1, limit=4
  $region2: #{_lambda_.4} parent=0 // loop_pre_header
    _
  $region3: #{_lambda_.4} parent=0 // loop_header
    %s9 = sphi 0, %s13
    %p10 = scmp.ge.s32.totalorder %s9, 4
    %s16 = sphi 0, %s35
    %s17 = sphi 0, %s31
    %s18 = sphi 0, %s27
    %s19 = sphi 0, %s16
    %s20 = sphi 0, %s17
    %s21 = sphi 0, %s18
    %s22 = sphi 0, %s19
    %s23 = sphi 0, %s20
    %s24 = sphi 0, %s21
    %s40 = sphi 0, %s42
    %s43 = sphi 0, %s40
    %s44 = sphi 0, %s43
    %s60 = sphi 0, %s44
    %s68 = sphi 0, %s70
    %s71 = sphi 0, %s68
    %s72 = sphi 0, %s71
    %s88 = sphi 0, %s72
    %s96 = sphi 0, %s98
    %s99 = sphi 0, %s96
    %s100 = sphi 0, %s99
    %s116 = sphi 0, %s100
    %s124 = sphi 0, %s126
    %s127 = sphi 0, %s124
    %s128 = sphi 0, %s127
    %s144 = sphi 0, %s128
  $region4: #{_lambda_.4} parent=0 // loop_header_branch
    %12 = sbr.rel (%p10) target = $region8
  $region5: #{_lambda_.4} parent=0 // loop_body
    %s14 = ssub.s32 %s9, 1
    %s15 = ssub.s32 %s9, 2
    %s25 = sadd.s32 1, %s18
    %p26 = scmp.ge.s32.totalorder %s25, 1
    %s27 = scalar_select %p26, 0, %s25
    %s28 = sadd.s32 1, %s17
    %s29 = scalar_select %p26, %s28, %s17
    %p30 = scmp.ge.s32.totalorder %s29, 1
    %s31 = scalar_select %p30, 0, %s29
    %s32 = sadd.s32 1, %s16
    %s33 = scalar_select %p30, %s32, %s16
    %p34 = scmp.ge.s32.totalorder %s33, 2
    %s35 = scalar_select %p34, 0, %s33
    %s36 = ssub.s32 %s16, %s35
    %s37 = ssub.s32 %s17, %s31
    %s38 = sor.u32 %s36, %s37
    %p39 = scmp.eq.s32.totalorder %s38, 0
    %s41 = sadd.s32 %s40, 1
    %s42 = scalar_select %p39, %s40, %s41
    %p45 = pneg %p39
    %p46 = scmp.eq.s32.totalorder %s9, 1
    %p47 = por %p45, %p46
    %p48 = scmp.ne.s32.totalorder %s40, %s43
    %p49 = scmp.eq.s32.totalorder %s9, 0
    %p50 = por %p48, %p49
    %p51 = scmp.ne.s32.totalorder %s40, %s43
    %p52 = scmp.eq.s32.totalorder %s14, 1
    %p53 = por %p51, %p52
    %p54 = scmp.ne.s32.totalorder %s43, %s44
    %p55 = scmp.eq.s32.totalorder %s14, 0
    %p56 = por %p54, %p55
    %p57 = scmp.ne.s32.totalorder %s43, %s44
    %p58 = scmp.eq.s32.totalorder %s15, 1
    %p59 = por %p57, %p58
    %p61 = scmp.ne.s32.totalorder %s44, %s60
    %p62 = scmp.eq.s32.totalorder %s15, 0
    %p63 = por %p61, %p62
    %s64 = ssub.s32 %s16, %s35
    %s65 = ssub.s32 %s18, %s27
    %s66 = sor.u32 %s64, %s65
    %p67 = scmp.eq.s32.totalorder %s66, 0
    %s69 = sadd.s32 %s68, 1
    %s70 = scalar_select %p67, %s68, %s69
    %p73 = pneg %p67
    %p74 = scmp.eq.s32.totalorder %s9, 1
    %p75 = por %p73, %p74
    %p76 = scmp.ne.s32.totalorder %s68, %s71
    %p77 = scmp.eq.s32.totalorder %s9, 0
    %p78 = por %p76, %p77
    %p79 = scmp.ne.s32.totalorder %s68, %s71
    %p80 = scmp.eq.s32.totalorder %s14, 1
    %p81 = por %p79, %p80
    %p82 = scmp.ne.s32.totalorder %s71, %s72
    %p83 = scmp.eq.s32.totalorder %s14, 0
    %p84 = por %p82, %p83
    %p85 = scmp.ne.s32.totalorder %s71, %s72
    %p86 = scmp.eq.s32.totalorder %s15, 1
    %p87 = por %p85, %p86
    %p89 = scmp.ne.s32.totalorder %s72, %s88
    %p90 = scmp.eq.s32.totalorder %s15, 0
    %p91 = por %p89, %p90
    %s92 = ssub.s32 %s16, %s35
    %s93 = ssub.s32 %s18, %s27
    %s94 = sor.u32 %s92, %s93
    %p95 = scmp.eq.s32.totalorder %s94, 0
    %s97 = sadd.s32 %s96, 1
    %s98 = scalar_select %p95, %s96, %s97
    %p101 = pneg %p95
    %p102 = scmp.eq.s32.totalorder %s9, 1
    %p103 = por %p101, %p102
    %p104 = scmp.ne.s32.totalorder %s96, %s99
    %p105 = scmp.eq.s32.totalorder %s9, 0
    %p106 = por %p104, %p105
    %p107 = scmp.ne.s32.totalorder %s96, %s99
    %p108 = scmp.eq.s32.totalorder %s14, 1
    %p109 = por %p107, %p108
    %p110 = scmp.ne.s32.totalorder %s99, %s100
    %p111 = scmp.eq.s32.totalorder %s14, 0
    %p112 = por %p110, %p111
    %p113 = scmp.ne.s32.totalorder %s99, %s100
    %p114 = scmp.eq.s32.totalorder %s15, 1
    %p115 = por %p113, %p114
    %p117 = scmp.ne.s32.totalorder %s100, %s116
    %p118 = scmp.eq.s32.totalorder %s15, 0
    %p119 = por %p117, %p118
    %s120 = ssub.s32 %s16, %s35
    %s121 = ssub.s32 %s17, %s31
    %s122 = sor.u32 %s120, %s121
    %p123 = scmp.eq.s32.totalorder %s122, 0
    %s125 = sadd.s32 %s124, 1
    %s126 = scalar_select %p123, %s124, %s125
    %p129 = pneg %p123
    %p130 = scmp.eq.s32.totalorder %s9, 1
    %p131 = por %p129, %p130
    %p132 = scmp.ne.s32.totalorder %s124, %s127
    %p133 = scmp.eq.s32.totalorder %s9, 0
    %p134 = por %p132, %p133
    %p135 = scmp.ne.s32.totalorder %s124, %s127
    %p136 = scmp.eq.s32.totalorder %s14, 1
    %p137 = por %p135, %p136
    %p138 = scmp.ne.s32.totalorder %s127, %s128
    %p139 = scmp.eq.s32.totalorder %s14, 0
    %p140 = por %p138, %p139
    %p141 = scmp.ne.s32.totalorder %s127, %s128
    %p142 = scmp.eq.s32.totalorder %s15, 1
    %p143 = por %p141, %p142
    %p145 = scmp.ne.s32.totalorder %s128, %s144
    %p146 = scmp.eq.s32.totalorder %s15, 0
    %p147 = por %p145, %p146
    %p148 = scmp.le.s32.totalorder 1, %s9
    %p149 = scmp.lt.s32.totalorder %s9, 3
    %p150 = pnand %p148, %p149
    %p151 = pneg %p150
    // Predicated region
    $region9: #{_lambda_.4} parent=5 // pred_check
      _
    $region10: #{_lambda_.4} parent=5 // pred_check_branch
      %153 = sbr.rel (%p150) target = $region12
    $region11: #{_lambda_.4} parent=5 // pred_region
      %s154 = ssub.s32 %s9, 1
    $region12: #{_lambda_.4} parent=5 // pred_fallthru
      _
    %p155 = scmp.lt.s32.totalorder %s9, 2
    // Predicated region
    $region13: #{_lambda_.4} parent=5 // pred_check
      %p156 = pneg %p155
    $region14: #{_lambda_.4} parent=5 // pred_check_branch
      %158 = sbr.rel (%p156) target = $region16
    $region15: #{_lambda_.4} parent=5 // pred_region
      // Predicated region
      $region17: #{_lambda_.4} parent=15 // pred_check
        %p159 = pneg %p50
      $region18: #{_lambda_.4} parent=15 // pred_check_branch
        %161 = sbr.rel (%p159) target = $region20
      $region19: #{_lambda_.4} parent=15 // pred_region
        %s162 = smul.u32 2, %s17
        %p163 = scmp.lt.s32.totalorder %s16, 1
        %s164 = scalar_select %p163, %s16, 1
        %p165 = scmp.lt.s32.totalorder %s162, 1
        %s166 = scalar_select %p165, %s162, 1
        %s167 = smul.addr %s164, 2
        %s168 = sadd.s32 %s166, %s167
        %s169 = smul.addr %s168, 4
        %s170 = scalar_lea.vmem %s0, %s169
        %s171 = smul.u32 2, %s17
      $region20: #{_lambda_.4} parent=15 // pred_fallthru
        _
      // Predicated region
      $region21: #{_lambda_.4} parent=15 // pred_check
        %p172 = pneg %p78
      $region22: #{_lambda_.4} parent=15 // pred_check_branch
        %174 = sbr.rel (%p172) target = $region24
      $region23: #{_lambda_.4} parent=15 // pred_region
        %s175 = smul.u32 2, %s18
        %p176 = scmp.lt.s32.totalorder %s16, 1
        %s177 = scalar_select %p176, %s16, 1
        %p178 = scmp.lt.s32.totalorder %s175, 1
        %s179 = scalar_select %p178, %s175, 1
        %s180 = smul.addr %s177, 2
        %s181 = sadd.s32 %s179, %s180
        %s182 = smul.addr %s181, 4
        %s183 = scalar_lea.vmem %s1, %s182
        %s184 = smul.u32 2, %s18
      $region24: #{_lambda_.4} parent=15 // pred_fallthru
        _
      // Predicated region
      $region25: #{_lambda_.4} parent=15 // pred_check
        %p185 = pneg %p106
      $region26: #{_lambda_.4} parent=15 // pred_check_branch
        %187 = sbr.rel (%p185) target = $region28
      $region27: #{_lambda_.4} parent=15 // pred_region
        %s188 = smul.u32 2, %s18
        %p189 = scmp.lt.s32.totalorder %s16, 1
        %s190 = scalar_select %p189, %s16, 1
        %p191 = scmp.lt.s32.totalorder %s188, 1
        %s192 = scalar_select %p191, %s188, 1
        %s193 = smul.addr %s190, 2
        %s194 = sadd.s32 %s192, %s193
        %s195 = smul.addr %s194, 4
        %s196 = scalar_lea.vmem %s2, %s195
        %s197 = smul.u32 2, %s18
      $region28: #{_lambda_.4} parent=15 // pred_fallthru
        _
    $region16: #{_lambda_.4} parent=5 // pred_fallthru
      _
    %p198 = scmp.le.s32.totalorder 1, %s9
    %p199 = scmp.lt.s32.totalorder %s9, 3
    %p200 = pnand %p198, %p199
    %p201 = pneg %p200
    // Predicated region
    $region29: #{_lambda_.4} parent=5 // pred_check
      _
    $region30: #{_lambda_.4} parent=5 // pred_check_branch
      %203 = sbr.rel (%p200) target = $region32
    $region31: #{_lambda_.4} parent=5 // pred_region
      %s204 = ssub.s32 %s9, 1
      %s205 = smul.u32 2, %s20
      %p206 = scmp.lt.s32.totalorder %s19, 1
      %s207 = scalar_select %p206, %s19, 1
      %p208 = scmp.lt.s32.totalorder %s205, 1
      %s209 = scalar_select %p208, %s205, 1
      %s210 = smul.addr %s207, 2
      %s211 = sadd.s32 %s209, %s210
      %s212 = smul.addr %s211, 4
      %s213 = scalar_lea.vmem %s0, %s212
      %p214 = pneg %p56
      %p215 = pneg %p53
      %s216 = smul.u32 2, %s21
      %p217 = scmp.lt.s32.totalorder %s19, 1
      %s218 = scalar_select %p217, %s19, 1
      %p219 = scmp.lt.s32.totalorder %s216, 1
      %s220 = scalar_select %p219, %s216, 1
      %s221 = smul.addr %s218, 2
      %s222 = sadd.s32 %s220, %s221
      %s223 = smul.addr %s222, 4
      %s224 = scalar_lea.vmem %s1, %s223
      %p225 = pneg %p84
      %p226 = pneg %p81
      %s227 = smul.u32 2, %s21
      %p228 = scmp.lt.s32.totalorder %s19, 1
      %s229 = scalar_select %p228, %s19, 1
      %p230 = scmp.lt.s32.totalorder %s227, 1
      %s231 = scalar_select %p230, %s227, 1
      %s232 = smul.addr %s229, 2
      %s233 = sadd.s32 %s231, %s232
      %s234 = smul.addr %s233, 4
      %s235 = scalar_lea.vmem %s2, %s234
      %p236 = pneg %p112
      %p237 = pneg %p109
      %p238 = pneg %p140
      %p239 = pneg %p137
      %s240 = smul.u32 2, %s20
      %p241 = scmp.lt.s32.totalorder %s19, 1
      %s242 = scalar_select %p241, %s19, 1
      %p243 = scmp.lt.s32.totalorder %s240, 1
      %s244 = scalar_select %p243, %s240, 1
      %s245 = smul.addr %s242, 2
      %s246 = sadd.s32 %s244, %s245
      %s247 = smul.addr %s246, 4
      %s248 = scalar_lea.vmem %s3, %s247
      %s249 = smul.u32 2, %s20
      %p250 = scmp.lt.s32.totalorder %s19, 1
      %s251 = scalar_select %p250, %s19, 1
      %p252 = scmp.lt.s32.totalorder %s249, 1
      %s253 = scalar_select %p252, %s249, 1
      %s254 = smul.addr %s251, 2
      %s255 = sadd.s32 %s253, %s254
      %s256 = smul.addr %s255, 4
      %s257 = scalar_lea.vmem %s0, %s256
      %s258 = smul.u32 2, %s20
      %s259 = smul.u32 2, %s21
      %p260 = scmp.lt.s32.totalorder %s19, 1
      %s261 = scalar_select %p260, %s19, 1
      %p262 = scmp.lt.s32.totalorder %s259, 1
      %s263 = scalar_select %p262, %s259, 1
      %s264 = smul.addr %s261, 2
      %s265 = sadd.s32 %s263, %s264
      %s266 = smul.addr %s265, 4
      %s267 = scalar_lea.vmem %s1, %s266
      %s268 = smul.u32 2, %s21
      %s269 = smul.u32 2, %s21
      %p270 = scmp.lt.s32.totalorder %s19, 1
      %s271 = scalar_select %p270, %s19, 1
      %p272 = scmp.lt.s32.totalorder %s269, 1
      %s273 = scalar_select %p272, %s269, 1
      %s274 = smul.addr %s271, 2
      %s275 = sadd.s32 %s273, %s274
      %s276 = smul.addr %s275, 4
      %s277 = scalar_lea.vmem %s2, %s276
      %s278 = smul.u32 2, %s21
      %s279 = smul.u32 2, %s20
      %p280 = scmp.lt.s32.totalorder %s19, 1
      %s281 = scalar_select %p280, %s19, 1
      %p282 = scmp.lt.s32.totalorder %s279, 1
      %s283 = scalar_select %p282, %s279, 1
      %s284 = smul.addr %s281, 2
      %s285 = sadd.s32 %s283, %s284
      %s286 = smul.addr %s285, 4
      %s287 = scalar_lea.vmem %s3, %s286
      %s288 = smul.u32 2, %s20
      %p290 = scmp.eq.s32.totalorder %s21, 0
      // Predicated region
      $region33: #{_lambda_.4} parent=31 // pred_check
        %p291 = pneg %p290
      $region34: #{_lambda_.4} parent=31 // pred_check_branch
        %293 = sbr.rel (%p291) target = $region36
      $region35: #{_lambda_.4} parent=31 // pred_region
        %vm294 = vcmask 7168
        %295 = vst.msk [vmem:[#allocation2] sm:$0xff] %vm294, -inf
        %296 = vst.msk [vmem:[#allocation2 + $0x8] sm:$0xff] %vm294, -inf
        %297 = vst.msk [vmem:[#allocation2 + $0x10] sm:$0xff] %vm294, -inf
        %298 = vst.msk [vmem:[#allocation2 + $0x18] sm:$0xff] %vm294, -inf
        %299 = vst.msk [vmem:[#allocation2 + $0x20] sm:$0xff] %vm294, -inf
        %300 = vst.msk [vmem:[#allocation2 + $0x28] sm:$0xff] %vm294, -inf
        %301 = vst.msk [vmem:[#allocation2 + $0x30] sm:$0xff] %vm294, -inf
        %302 = vst.msk [vmem:[#allocation2 + $0x38] sm:$0xff] %vm294, -inf
        %303 = vst.msk [vmem:[#allocation3] sm:$0xff] %vm294, 0.0
        %304 = vst.msk [vmem:[#allocation3 + $0x8] sm:$0xff] %vm294, 0.0
        %305 = vst.msk [vmem:[#allocation3 + $0x10] sm:$0xff] %vm294, 0.0
        %306 = vst.msk [vmem:[#allocation3 + $0x18] sm:$0xff] %vm294, 0.0
        %307 = vst.msk [vmem:[#allocation3 + $0x20] sm:$0xff] %vm294, 0.0
        %308 = vst.msk [vmem:[#allocation3 + $0x28] sm:$0xff] %vm294, 0.0
        %309 = vst.msk [vmem:[#allocation3 + $0x30] sm:$0xff] %vm294, 0.0
        %310 = vst.msk [vmem:[#allocation3 + $0x38] sm:$0xff] %vm294, 0.0
        %vm311 = vcmask 64512
        %312 = vst.msk [vmem:[#allocation4] sm:$0xff] %vm311, 0.0
        %313 = vst.msk [vmem:[#allocation4 + $0x8] sm:$0xff] %vm311, 0.0
        %314 = vst.msk [vmem:[#allocation4 + $0x10] sm:$0xff] %vm311, 0.0
        %315 = vst.msk [vmem:[#allocation4 + $0x18] sm:$0xff] %vm311, 0.0
        %316 = vst.msk [vmem:[#allocation4 + $0x20] sm:$0xff] %vm311, 0.0
        %317 = vst.msk [vmem:[#allocation4 + $0x28] sm:$0xff] %vm311, 0.0
        %318 = vst.msk [vmem:[#allocation4 + $0x30] sm:$0xff] %vm311, 0.0
        %319 = vst.msk [vmem:[#allocation4 + $0x38] sm:$0xff] %vm311, 0.0
      $region36: #{_lambda_.4} parent=31 // pred_fallthru
        _
      %v320 = vld [vmem:[%s257] sm:$0xf]
      %v321 = vld [vmem:[%s257 + $0x4] sm:$0xf]
      %v322 = vld [vmem:[%s267] sm:$0xf]
      %v323 = vld [vmem:[%s267 + $0x4] sm:$0xf]
      %v324 = vld [vmem:[%s277] sm:$0xf]
      %v325 = vld [vmem:[%s277 + $0x4] sm:$0xf]
      %v328 = vunpack.c.l.b16 %v320
      %v329 = vunpack.c.l.b16 %v321
      %v330 = vpack.c.b16 %v329, %v328
      %v333 = vunpack.c.l.b16 %v322
      %v334 = vunpack.c.l.b16 %v323
      %v335 = vpack.c.b16 %v334, %v333
      %vm336 = vcmask 64512
      %v338 = vsel %vm336, %v330, 0
      %v341 = vsel %vm336, %v335, 0
      %343 = vmatprep.subr.bf16.mxu0 0
      %344 = vmatpush1.bf16.xpose.msra.mxu0 0
      %345 = vmatprep.subr.bf16.mxu0 0
      %346 = vmatpush1.bf16.xpose.msra.mxu0 0
      %347 = vmatprep.subr.bf16.mxu0 0
      %348 = vmatpush1.bf16.xpose.msra.mxu0 0
      %349 = vmatprep.subr.bf16.mxu0 0
      %350 = vmatpush1.bf16.xpose.msra.mxu0 0
      %351 = vmatprep.subr.bf16.mxu0 0
      %352 = vmatpush1.bf16.xpose.msra.mxu0 0
      %353 = vmatprep.subr.bf16.mxu0 0
      %354 = vmatpush1.bf16.xpose.msra.mxu0 0
      %355 = vmatprep.subr.bf16.mxu0 0
      %356 = vmatpush1.bf16.xpose.msra.mxu0 0
      %357 = vmatprep.subr.bf16.mxu0 0
      %358 = vmatpush1.bf16.xpose.msra.mxu0 %v341
      %359 = vmatprep.subr.bf16.mxu0 0
      %360 = vmatpush2.bf16.xpose.msra.mxu0 0
      %361 = vmatprep.subr.bf16.mxu0 0
      %362 = vmatpush2.bf16.xpose.msra.mxu0 0
      %363 = vmatprep.subr.bf16.mxu0 0
      %364 = vmatpush2.bf16.xpose.msra.mxu0 0
      %365 = vmatprep.subr.bf16.mxu0 0
      %366 = vmatpush2.bf16.xpose.msra.mxu0 0
      %367 = vmatprep.subr.bf16.mxu0 0
      %368 = vmatpush2.bf16.xpose.msra.mxu0 0
      %369 = vmatprep.subr.bf16.mxu0 0
      %370 = vmatpush2.bf16.xpose.msra.mxu0 0
      %371 = vmatprep.subr.bf16.mxu0 0
      %372 = vmatpush2.bf16.xpose.msra.mxu0 0
      %373 = vmatprep.subr.bf16.mxu0 0
      %374 = vmatpush2.bf16.xpose.msra.mxu0 0
      %375 = vmatprep.mubr.bf16.mxu0 0
      %376 = vmatmul.mubr.bf16.gmra.mxu0 %v338
      %v377 = vpop.f32.mrf.mxu0
      %v378 = vadd.f32 0.0, %v377
      %v379 = vpop.f32.mrf.mxu0
      %v380 = vpop.f32.mrf.mxu0
      %v381 = vadd.f32 0.0, %v380
      %v382 = vpop.f32.mrf.mxu0
      %383 = vdwg.mxu0
      %v384 = vmul.f32 %v378, 0.35355338
      %v385 = vmul.f32 %v381, 0.35355338
      %v386 = vld [vmem:[#allocation2] sm:$0xff]
      %v387 = vld [vmem:[#allocation2 + $0x8] sm:$0xff]
      %vm388 = vcmask 130048
      %v389 = vsel %vm388, %v384, -inf
      %390 = vmax.xlane.f32.xlu0 %v389
      %v391 = vpop.xlane.xlu0 %390
      %v392 = vsel %vm388, %v385, -inf
      %393 = vmax.xlane.f32.xlu0 %v392
      %v394 = vpop.xlane.xlu0 %393
      %v395 = vmax.f32 %v386, %v391
      %v396 = vmax.f32 %v387, %v394
      %v397 = vsub.f32 %v386, %v395
      %v398 = vsub.f32 %v387, %v396
      %v399 = vmul.f32 %v397, 1.442695
      %v400 = vpow.pop %v399
      %v401 = vmul.f32 %v398, 1.442695
      %v402 = vpow.pop %v401
      %404 = vset.pattern.permute.xlu0 0
      %405 = vperm.xlu0 %404, %v395
      %v406 = vpop.permute.xlu0 %405
      %409 = vset.pattern.permute.xlu0 0
      %410 = vperm.xlu0 %409, %v396
      %v411 = vpop.permute.xlu0 %410
      %v413 = vsub.f32 %v384, %v406
      %v414 = vsub.f32 %v385, %v411
      %v415 = vmul.f32 %v413, 1.442695
      %v416 = vpow.pop %v415
      %v417 = vmul.f32 %v414, 1.442695
      %v418 = vpow.pop %v417
      %v419 = vld [vmem:[#allocation3] sm:$0xff]
      %v420 = vld [vmem:[#allocation3 + $0x8] sm:$0xff]
      %v421 = vmul.f32 %v400, %v419
      %v422 = vmul.f32 %v402, %v420
      %v423 = vsel %vm388, %v416, 0.0
      %424 = vadd.xlane.f32.xlu0 %v423
      %v425 = vpop.xlane.xlu0 %424
      %v426 = vsel %vm388, %v418, 0.0
      %427 = vadd.xlane.f32.xlu0 %v426
      %v428 = vpop.xlane.xlu0 %427
      %v429 = vadd.f32 %v421, %v425
      %v430 = vadd.f32 %v422, %v428
      %vm431 = vcmask 7168
      %432 = vst.msk [vmem:[#allocation3] sm:$0xff] %vm431, %v429
      %433 = vst.msk [vmem:[#allocation3 + $0x8] sm:$0xff] %vm431, %v430
      %v434 = vld [vmem:[#allocation4] sm:$0xff]
      %v435 = vld [vmem:[#allocation4 + $0x8] sm:$0xff]
      %437 = vset.pattern.permute.xlu0 0
      %438 = vperm.xlu0 %437, %v400
      %v439 = vpop.permute.xlu0 %438
      %442 = vset.pattern.permute.xlu0 0
      %443 = vperm.xlu0 %442, %v402
      %v444 = vpop.permute.xlu0 %443
      %v446 = vmul.f32 %v439, %v434
      %v447 = vmul.f32 %v444, %v435
      %v448 = vpack.c.bf16 %v418, %v416
      %v451 = vunpack.c.l.b16 %v324
      %v452 = vunpack.c.l.b16 %v325
      %v453 = vpack.c.b16 %v452, %v451
      %v456 = vsel %vm388, %v448, 0
      %458 = vmatprep.subr.bf16.mxu0 0
      %459 = vmatpush1.bf16.msra.mxu0 0
      %460 = vmatprep.subr.bf16.mxu0 0
      %461 = vmatpush1.bf16.msra.mxu0 0
      %462 = vmatprep.subr.bf16.mxu0 0
      %463 = vmatpush1.bf16.msra.mxu0 0
      %464 = vmatprep.subr.bf16.mxu0 0
      %465 = vmatpush1.bf16.msra.mxu0 0
      %466 = vmatprep.subr.bf16.mxu0 0
      %467 = vmatpush1.bf16.msra.mxu0 0
      %468 = vmatprep.subr.bf16.mxu0 0
      %469 = vmatpush1.bf16.msra.mxu0 0
      %470 = vmatprep.subr.bf16.mxu0 0
      %471 = vmatpush1.bf16.msra.mxu0 0
      %472 = vmatprep.subr.bf16.mxu0 0
      %473 = vmatpush1.bf16.msra.mxu0 %v453
      %474 = vmatprep.subr.bf16.mxu0 0
      %475 = vmatpush2.bf16.msra.mxu0 0
      %476 = vmatprep.subr.bf16.mxu0 0
      %477 = vmatpush2.bf16.msra.mxu0 0
      %478 = vmatprep.subr.bf16.mxu0 0
      %479 = vmatpush2.bf16.msra.mxu0 0
      %480 = vmatprep.subr.bf16.mxu0 0
      %481 = vmatpush2.bf16.msra.mxu0 0
      %482 = vmatprep.subr.bf16.mxu0 0
      %483 = vmatpush2.bf16.msra.mxu0 0
      %484 = vmatprep.subr.bf16.mxu0 0
      %485 = vmatpush2.bf16.msra.mxu0 0
      %486 = vmatprep.subr.bf16.mxu0 0
      %487 = vmatpush2.bf16.msra.mxu0 0
      %488 = vmatprep.subr.bf16.mxu0 0
      %489 = vmatpush2.bf16.msra.mxu0 0
      %490 = vmatprep.mubr.bf16.mxu0 0
      %491 = vmatmul.mubr.bf16.gmra.mxu0 %v456
      %v492 = vpop.f32.mrf.mxu0
      %v493 = vadd.f32 0.0, %v492
      %v494 = vpop.f32.mrf.mxu0
      %v495 = vpop.f32.mrf.mxu0
      %v496 = vadd.f32 0.0, %v495
      %v497 = vpop.f32.mrf.mxu0
      %498 = vdwg.mxu0
      %v499 = vadd.f32 %v446, %v493
      %v500 = vadd.f32 %v447, %v496
      %501 = vst.msk [vmem:[#allocation4] sm:$0xff] %vm336, %v499
      %502 = vst.msk [vmem:[#allocation4 + $0x8] sm:$0xff] %vm336, %v500
      %503 = vst.msk [vmem:[#allocation2] sm:$0xff] %vm431, %v395
      %504 = vst.msk [vmem:[#allocation2 + $0x8] sm:$0xff] %vm431, %v396
      %505 = vrot.lane.b32.xlu0 %v330, 120
      %v506 = vpop.permute.xlu0 %505
      %507 = vrot.lane.b32.xlu0 %v335, 120
      %v508 = vpop.permute.xlu0 %507
      %v510 = vsel %vm336, %v506, 0
      %v513 = vsel %vm336, %v508, 0
      %515 = vmatprep.subr.bf16.mxu0 0
      %516 = vmatpush1.bf16.xpose.msra.mxu0 0
      %517 = vmatprep.subr.bf16.mxu0 0
      %518 = vmatpush1.bf16.xpose.msra.mxu0 0
      %519 = vmatprep.subr.bf16.mxu0 0
      %520 = vmatpush1.bf16.xpose.msra.mxu0 0
      %521 = vmatprep.subr.bf16.mxu0 0
      %522 = vmatpush1.bf16.xpose.msra.mxu0 0
      %523 = vmatprep.subr.bf16.mxu0 0
      %524 = vmatpush1.bf16.xpose.msra.mxu0 0
      %525 = vmatprep.subr.bf16.mxu0 0
      %526 = vmatpush1.bf16.xpose.msra.mxu0 0
      %527 = vmatprep.subr.bf16.mxu0 0
      %528 = vmatpush1.bf16.xpose.msra.mxu0 0
      %529 = vmatprep.subr.bf16.mxu0 0
      %530 = vmatpush1.bf16.xpose.msra.mxu0 %v513
      %531 = vmatprep.subr.bf16.mxu0 0
      %532 = vmatpush2.bf16.xpose.msra.mxu0 0
      %533 = vmatprep.subr.bf16.mxu0 0
      %534 = vmatpush2.bf16.xpose.msra.mxu0 0
      %535 = vmatprep.subr.bf16.mxu0 0
      %536 = vmatpush2.bf16.xpose.msra.mxu0 0
      %537 = vmatprep.subr.bf16.mxu0 0
      %538 = vmatpush2.bf16.xpose.msra.mxu0 0
      %539 = vmatprep.subr.bf16.mxu0 0
      %540 = vmatpush2.bf16.xpose.msra.mxu0 0
      %541 = vmatprep.subr.bf16.mxu0 0
      %542 = vmatpush2.bf16.xpose.msra.mxu0 0
      %543 = vmatprep.subr.bf16.mxu0 0
      %544 = vmatpush2.bf16.xpose.msra.mxu0 0
      %545 = vmatprep.subr.bf16.mxu0 0
      %546 = vmatpush2.bf16.xpose.msra.mxu0 0
      %547 = vmatprep.mubr.bf16.mxu0 0
      %548 = vmatmul.mubr.bf16.gmra.mxu0 %v510
      %v549 = vpop.f32.mrf.mxu0
      %v550 = vadd.f32 0.0, %v549
      %v551 = vpop.f32.mrf.mxu0
      %v552 = vpop.f32.mrf.mxu0
      %v553 = vadd.f32 0.0, %v552
      %v554 = vpop.f32.mrf.mxu0
      %555 = vdwg.mxu0
      %v556 = vmul.f32 %v550, 0.35355338
      %v557 = vmul.f32 %v553, 0.35355338
      %s558 = scalar_lea.vmem [#allocation2], 16
      %v559 = vld [vmem:[%s558] sm:$0xff]
      %v560 = vld [vmem:[%s558 + $0x8] sm:$0xff]
      %v561 = vsel %vm388, %v556, -inf
      %562 = vmax.xlane.f32.xlu0 %v561
      %v563 = vpop.xlane.xlu0 %562
      %v564 = vsel %vm388, %v557, -inf
      %565 = vmax.xlane.f32.xlu0 %v564
      %v566 = vpop.xlane.xlu0 %565
      %v567 = vmax.f32 %v559, %v563
      %v568 = vmax.f32 %v560, %v566
      %v569 = vsub.f32 %v559, %v567
      %v570 = vsub.f32 %v560, %v568
      %v571 = vmul.f32 %v569, 1.442695
      %v572 = vpow.pop %v571
      %v573 = vmul.f32 %v570, 1.442695
      %v574 = vpow.pop %v573
      %576 = vset.pattern.permute.xlu0 0
      %577 = vperm.xlu0 %576, %v567
      %v578 = vpop.permute.xlu0 %577
      %581 = vset.pattern.permute.xlu0 0
      %582 = vperm.xlu0 %581, %v568
      %v583 = vpop.permute.xlu0 %582
      %v585 = vsub.f32 %v556, %v578
      %v586 = vsub.f32 %v557, %v583
      %v587 = vmul.f32 %v585, 1.442695
      %v588 = vpow.pop %v587
      %v589 = vmul.f32 %v586, 1.442695
      %v590 = vpow.pop %v589
      %s591 = scalar_lea.vmem [#allocation3], 16
      %v592 = vld [vmem:[%s591] sm:$0xff]
      %v593 = vld [vmem:[%s591 + $0x8] sm:$0xff]
      %v594 = vmul.f32 %v572, %v592
      %v595 = vmul.f32 %v574, %v593
      %v596 = vsel %vm388, %v588, 0.0
      %597 = vadd.xlane.f32.xlu0 %v596
      %v598 = vpop.xlane.xlu0 %597
      %v599 = vsel %vm388, %v590, 0.0
      %600 = vadd.xlane.f32.xlu0 %v599
      %v601 = vpop.xlane.xlu0 %600
      %v602 = vadd.f32 %v594, %v598
      %v603 = vadd.f32 %v595, %v601
      %604 = vst.msk [vmem:[%s591] sm:$0xff] %vm431, %v602
      %605 = vst.msk [vmem:[%s591 + $0x8] sm:$0xff] %vm431, %v603
      %s606 = scalar_lea.vmem [#allocation4], 16
      %v607 = vld [vmem:[%s606] sm:$0xff]
      %v608 = vld [vmem:[%s606 + $0x8] sm:$0xff]
      %610 = vset.pattern.permute.xlu0 0
      %611 = vperm.xlu0 %610, %v572
      %v612 = vpop.permute.xlu0 %611
      %615 = vset.pattern.permute.xlu0 0
      %616 = vperm.xlu0 %615, %v574
      %v617 = vpop.permute.xlu0 %616
      %v619 = vmul.f32 %v612, %v607
      %v620 = vmul.f32 %v617, %v608
      %v621 = vpack.c.bf16 %v590, %v588
      %622 = vrot.lane.b32.xlu0 %v453, 120
      %v623 = vpop.permute.xlu0 %622
      %v626 = vsel %vm388, %v621, 0
      %628 = vmatprep.subr.bf16.mxu0 0
      %629 = vmatpush1.bf16.msra.mxu0 0
      %630 = vmatprep.subr.bf16.mxu0 0
      %631 = vmatpush1.bf16.msra.mxu0 0
      %632 = vmatprep.subr.bf16.mxu0 0
      %633 = vmatpush1.bf16.msra.mxu0 0
      %634 = vmatprep.subr.bf16.mxu0 0
      %635 = vmatpush1.bf16.msra.mxu0 0
      %636 = vmatprep.subr.bf16.mxu0 0
      %637 = vmatpush1.bf16.msra.mxu0 0
      %638 = vmatprep.subr.bf16.mxu0 0
      %639 = vmatpush1.bf16.msra.mxu0 0
      %640 = vmatprep.subr.bf16.mxu0 0
      %641 = vmatpush1.bf16.msra.mxu0 0
      %642 = vmatprep.subr.bf16.mxu0 0
      %643 = vmatpush1.bf16.msra.mxu0 %v623
      %644 = vmatprep.subr.bf16.mxu0 0
      %645 = vmatpush2.bf16.msra.mxu0 0
      %646 = vmatprep.subr.bf16.mxu0 0
      %647 = vmatpush2.bf16.msra.mxu0 0
      %648 = vmatprep.subr.bf16.mxu0 0
      %649 = vmatpush2.bf16.msra.mxu0 0
      %650 = vmatprep.subr.bf16.mxu0 0
      %651 = vmatpush2.bf16.msra.mxu0 0
      %652 = vmatprep.subr.bf16.mxu0 0
      %653 = vmatpush2.bf16.msra.mxu0 0
      %654 = vmatprep.subr.bf16.mxu0 0
      %655 = vmatpush2.bf16.msra.mxu0 0
      %656 = vmatprep.subr.bf16.mxu0 0
      %657 = vmatpush2.bf16.msra.mxu0 0
      %658 = vmatprep.subr.bf16.mxu0 0
      %659 = vmatpush2.bf16.msra.mxu0 0
      %660 = vmatprep.mubr.bf16.mxu0 0
      %661 = vmatmul.mubr.bf16.gmra.mxu0 %v626
      %v662 = vpop.f32.mrf.mxu0
      %v663 = vadd.f32 0.0, %v662
      %v664 = vpop.f32.mrf.mxu0
      %v665 = vpop.f32.mrf.mxu0
      %v666 = vadd.f32 0.0, %v665
      %v667 = vpop.f32.mrf.mxu0
      %668 = vdwg.mxu0
      %v669 = vadd.f32 %v619, %v663
      %v670 = vadd.f32 %v620, %v666
      %671 = vst.msk [vmem:[%s606] sm:$0xff] %vm336, %v669
      %672 = vst.msk [vmem:[%s606 + $0x8] sm:$0xff] %vm336, %v670
      %673 = vst.msk [vmem:[%s558] sm:$0xff] %vm431, %v567
      %674 = vst.msk [vmem:[%s558 + $0x8] sm:$0xff] %vm431, %v568
      %675 = vrot.lane.b32.xlu0 %v330, 112
      %v676 = vpop.permute.xlu0 %675
      %677 = vrot.lane.b32.xlu0 %v335, 112
      %v678 = vpop.permute.xlu0 %677
      %v680 = vsel %vm336, %v676, 0
      %v683 = vsel %vm336, %v678, 0
      %685 = vmatprep.subr.bf16.mxu0 0
      %686 = vmatpush1.bf16.xpose.msra.mxu0 0
      %687 = vmatprep.subr.bf16.mxu0 0
      %688 = vmatpush1.bf16.xpose.msra.mxu0 0
      %689 = vmatprep.subr.bf16.mxu0 0
      %690 = vmatpush1.bf16.xpose.msra.mxu0 0
      %691 = vmatprep.subr.bf16.mxu0 0
      %692 = vmatpush1.bf16.xpose.msra.mxu0 0
      %693 = vmatprep.subr.bf16.mxu0 0
      %694 = vmatpush1.bf16.xpose.msra.mxu0 0
      %695 = vmatprep.subr.bf16.mxu0 0
      %696 = vmatpush1.bf16.xpose.msra.mxu0 0
      %697 = vmatprep.subr.bf16.mxu0 0
      %698 = vmatpush1.bf16.xpose.msra.mxu0 0
      %699 = vmatprep.subr.bf16.mxu0 0
      %700 = vmatpush1.bf16.xpose.msra.mxu0 %v683
      %701 = vmatprep.subr.bf16.mxu0 0
      %702 = vmatpush2.bf16.xpose.msra.mxu0 0
      %703 = vmatprep.subr.bf16.mxu0 0
      %704 = vmatpush2.bf16.xpose.msra.mxu0 0
      %705 = vmatprep.subr.bf16.mxu0 0
      %706 = vmatpush2.bf16.xpose.msra.mxu0 0
      %707 = vmatprep.subr.bf16.mxu0 0
      %708 = vmatpush2.bf16.xpose.msra.mxu0 0
      %709 = vmatprep.subr.bf16.mxu0 0
      %710 = vmatpush2.bf16.xpose.msra.mxu0 0
      %711 = vmatprep.subr.bf16.mxu0 0
      %712 = vmatpush2.bf16.xpose.msra.mxu0 0
      %713 = vmatprep.subr.bf16.mxu0 0
      %714 = vmatpush2.bf16.xpose.msra.mxu0 0
      %715 = vmatprep.subr.bf16.mxu0 0
      %716 = vmatpush2.bf16.xpose.msra.mxu0 0
      %717 = vmatprep.mubr.bf16.mxu0 0
      %718 = vmatmul.mubr.bf16.gmra.mxu0 %v680
      %v719 = vpop.f32.mrf.mxu0
      %v720 = vadd.f32 0.0, %v719
      %v721 = vpop.f32.mrf.mxu0
      %v722 = vpop.f32.mrf.mxu0
      %v723 = vadd.f32 0.0, %v722
      %v724 = vpop.f32.mrf.mxu0
      %725 = vdwg.mxu0
      %v726 = vmul.f32 %v720, 0.35355338
      %v727 = vmul.f32 %v723, 0.35355338
      %s728 = scalar_lea.vmem [#allocation2], 32
      %v729 = vld [vmem:[%s728] sm:$0xff]
      %v730 = vld [vmem:[%s728 + $0x8] sm:$0xff]
      %v731 = vsel %vm388, %v726, -inf
      %732 = vmax.xlane.f32.xlu0 %v731
      %v733 = vpop.xlane.xlu0 %732
      %v734 = vsel %vm388, %v727, -inf
      %735 = vmax.xlane.f32.xlu0 %v734
      %v736 = vpop.xlane.xlu0 %735
      %v737 = vmax.f32 %v729, %v733
      %v738 = vmax.f32 %v730, %v736
      %v739 = vsub.f32 %v729, %v737
      %v740 = vsub.f32 %v730, %v738
      %v741 = vmul.f32 %v739, 1.442695
      %v742 = vpow.pop %v741
      %v743 = vmul.f32 %v740, 1.442695
      %v744 = vpow.pop %v743
      %746 = vset.pattern.permute.xlu0 0
      %747 = vperm.xlu0 %746, %v737
      %v748 = vpop.permute.xlu0 %747
      %751 = vset.pattern.permute.xlu0 0
      %752 = vperm.xlu0 %751, %v738
      %v753 = vpop.permute.xlu0 %752
      %v755 = vsub.f32 %v726, %v748
      %v756 = vsub.f32 %v727, %v753
      %v757 = vmul.f32 %v755, 1.442695
      %v758 = vpow.pop %v757
      %v759 = vmul.f32 %v756, 1.442695
      %v760 = vpow.pop %v759
      %s761 = scalar_lea.vmem [#allocation3], 32
      %v762 = vld [vmem:[%s761] sm:$0xff]
      %v763 = vld [vmem:[%s761 + $0x8] sm:$0xff]
      %v764 = vmul.f32 %v742, %v762
      %v765 = vmul.f32 %v744, %v763
      %v766 = vsel %vm388, %v758, 0.0
      %767 = vadd.xlane.f32.xlu0 %v766
      %v768 = vpop.xlane.xlu0 %767
      %v769 = vsel %vm388, %v760, 0.0
      %770 = vadd.xlane.f32.xlu0 %v769
      %v771 = vpop.xlane.xlu0 %770
      %v772 = vadd.f32 %v764, %v768
      %v773 = vadd.f32 %v765, %v771
      %774 = vst.msk [vmem:[%s761] sm:$0xff] %vm431, %v772
      %775 = vst.msk [vmem:[%s761 + $0x8] sm:$0xff] %vm431, %v773
      %s776 = scalar_lea.vmem [#allocation4], 32
      %v777 = vld [vmem:[%s776] sm:$0xff]
      %v778 = vld [vmem:[%s776 + $0x8] sm:$0xff]
      %780 = vset.pattern.permute.xlu0 0
      %781 = vperm.xlu0 %780, %v742
      %v782 = vpop.permute.xlu0 %781
      %785 = vset.pattern.permute.xlu0 0
      %786 = vperm.xlu0 %785, %v744
      %v787 = vpop.permute.xlu0 %786
      %v789 = vmul.f32 %v782, %v777
      %v790 = vmul.f32 %v787, %v778
      %v791 = vpack.c.bf16 %v760, %v758
      %792 = vrot.lane.b32.xlu0 %v453, 112
      %v793 = vpop.permute.xlu0 %792
      %v796 = vsel %vm388, %v791, 0
      %798 = vmatprep.subr.bf16.mxu0 0
      %799 = vmatpush1.bf16.msra.mxu0 0
      %800 = vmatprep.subr.bf16.mxu0 0
      %801 = vmatpush1.bf16.msra.mxu0 0
      %802 = vmatprep.subr.bf16.mxu0 0
      %803 = vmatpush1.bf16.msra.mxu0 0
      %804 = vmatprep.subr.bf16.mxu0 0
      %805 = vmatpush1.bf16.msra.mxu0 0
      %806 = vmatprep.subr.bf16.mxu0 0
      %807 = vmatpush1.bf16.msra.mxu0 0
      %808 = vmatprep.subr.bf16.mxu0 0
      %809 = vmatpush1.bf16.msra.mxu0 0
      %810 = vmatprep.subr.bf16.mxu0 0
      %811 = vmatpush1.bf16.msra.mxu0 0
      %812 = vmatprep.subr.bf16.mxu0 0
      %813 = vmatpush1.bf16.msra.mxu0 %v793
      %814 = vmatprep.subr.bf16.mxu0 0
      %815 = vmatpush2.bf16.msra.mxu0 0
      %816 = vmatprep.subr.bf16.mxu0 0
      %817 = vmatpush2.bf16.msra.mxu0 0
      %818 = vmatprep.subr.bf16.mxu0 0
      %819 = vmatpush2.bf16.msra.mxu0 0
      %820 = vmatprep.subr.bf16.mxu0 0
      %821 = vmatpush2.bf16.msra.mxu0 0
      %822 = vmatprep.subr.bf16.mxu0 0
      %823 = vmatpush2.bf16.msra.mxu0 0
      %824 = vmatprep.subr.bf16.mxu0 0
      %825 = vmatpush2.bf16.msra.mxu0 0
      %826 = vmatprep.subr.bf16.mxu0 0
      %827 = vmatpush2.bf16.msra.mxu0 0
      %828 = vmatprep.subr.bf16.mxu0 0
      %829 = vmatpush2.bf16.msra.mxu0 0
      %830 = vmatprep.mubr.bf16.mxu0 0
      %831 = vmatmul.mubr.bf16.gmra.mxu0 %v796
      %v832 = vpop.f32.mrf.mxu0
      %v833 = vadd.f32 0.0, %v832
      %v834 = vpop.f32.mrf.mxu0
      %v835 = vpop.f32.mrf.mxu0
      %v836 = vadd.f32 0.0, %v835
      %v837 = vpop.f32.mrf.mxu0
      %838 = vdwg.mxu0
      %v839 = vadd.f32 %v789, %v833
      %v840 = vadd.f32 %v790, %v836
      %841 = vst.msk [vmem:[%s776] sm:$0xff] %vm336, %v839
      %842 = vst.msk [vmem:[%s776 + $0x8] sm:$0xff] %vm336, %v840
      %843 = vst.msk [vmem:[%s728] sm:$0xff] %vm431, %v737
      %844 = vst.msk [vmem:[%s728 + $0x8] sm:$0xff] %vm431, %v738
      %845 = vrot.lane.b32.xlu0 %v330, 104
      %v846 = vpop.permute.xlu0 %845
      %847 = vrot.lane.b32.xlu0 %v335, 104
      %v848 = vpop.permute.xlu0 %847
      %v850 = vsel %vm336, %v846, 0
      %v853 = vsel %vm336, %v848, 0
      %855 = vmatprep.subr.bf16.mxu0 0
      %856 = vmatpush1.bf16.xpose.msra.mxu0 0
      %857 = vmatprep.subr.bf16.mxu0 0
      %858 = vmatpush1.bf16.xpose.msra.mxu0 0
      %859 = vmatprep.subr.bf16.mxu0 0
      %860 = vmatpush1.bf16.xpose.msra.mxu0 0
      %861 = vmatprep.subr.bf16.mxu0 0
      %862 = vmatpush1.bf16.xpose.msra.mxu0 0
      %863 = vmatprep.subr.bf16.mxu0 0
      %864 = vmatpush1.bf16.xpose.msra.mxu0 0
      %865 = vmatprep.subr.bf16.mxu0 0
      %866 = vmatpush1.bf16.xpose.msra.mxu0 0
      %867 = vmatprep.subr.bf16.mxu0 0
      %868 = vmatpush1.bf16.xpose.msra.mxu0 0
      %869 = vmatprep.subr.bf16.mxu0 0
      %870 = vmatpush1.bf16.xpose.msra.mxu0 %v853
      %871 = vmatprep.subr.bf16.mxu0 0
      %872 = vmatpush2.bf16.xpose.msra.mxu0 0
      %873 = vmatprep.subr.bf16.mxu0 0
      %874 = vmatpush2.bf16.xpose.msra.mxu0 0
      %875 = vmatprep.subr.bf16.mxu0 0
      %876 = vmatpush2.bf16.xpose.msra.mxu0 0
      %877 = vmatprep.subr.bf16.mxu0 0
      %878 = vmatpush2.bf16.xpose.msra.mxu0 0
      %879 = vmatprep.subr.bf16.mxu0 0
      %880 = vmatpush2.bf16.xpose.msra.mxu0 0
      %881 = vmatprep.subr.bf16.mxu0 0
      %882 = vmatpush2.bf16.xpose.msra.mxu0 0
      %883 = vmatprep.subr.bf16.mxu0 0
      %884 = vmatpush2.bf16.xpose.msra.mxu0 0
      %885 = vmatprep.subr.bf16.mxu0 0
      %886 = vmatpush2.bf16.xpose.msra.mxu0 0
      %887 = vmatprep.mubr.bf16.mxu0 0
      %888 = vmatmul.mubr.bf16.gmra.mxu0 %v850
      %v889 = vpop.f32.mrf.mxu0
      %v890 = vadd.f32 0.0, %v889
      %v891 = vpop.f32.mrf.mxu0
      %v892 = vpop.f32.mrf.mxu0
      %v893 = vadd.f32 0.0, %v892
      %v894 = vpop.f32.mrf.mxu0
      %895 = vdwg.mxu0
      %v896 = vmul.f32 %v890, 0.35355338
      %v897 = vmul.f32 %v893, 0.35355338
      %s898 = scalar_lea.vmem [#allocation2], 48
      %v899 = vld [vmem:[%s898] sm:$0xff]
      %v900 = vld [vmem:[%s898 + $0x8] sm:$0xff]
      %v901 = vsel %vm388, %v896, -inf
      %902 = vmax.xlane.f32.xlu0 %v901
      %v903 = vpop.xlane.xlu0 %902
      %v904 = vsel %vm388, %v897, -inf
      %905 = vmax.xlane.f32.xlu0 %v904
      %v906 = vpop.xlane.xlu0 %905
      %v907 = vmax.f32 %v899, %v903
      %v908 = vmax.f32 %v900, %v906
      %v909 = vsub.f32 %v899, %v907
      %v910 = vsub.f32 %v900, %v908
      %v911 = vmul.f32 %v909, 1.442695
      %v912 = vpow.pop %v911
      %v913 = vmul.f32 %v910, 1.442695
      %v914 = vpow.pop %v913
      %916 = vset.pattern.permute.xlu0 0
      %917 = vperm.xlu0 %916, %v907
      %v918 = vpop.permute.xlu0 %917
      %921 = vset.pattern.permute.xlu0 0
      %922 = vperm.xlu0 %921, %v908
      %v923 = vpop.permute.xlu0 %922
      %v925 = vsub.f32 %v896, %v918
      %v926 = vsub.f32 %v897, %v923
      %v927 = vmul.f32 %v925, 1.442695
      %v928 = vpow.pop %v927
      %v929 = vmul.f32 %v926, 1.442695
      %v930 = vpow.pop %v929
      %s931 = scalar_lea.vmem [#allocation3], 48
      %v932 = vld [vmem:[%s931] sm:$0xff]
      %v933 = vld [vmem:[%s931 + $0x8] sm:$0xff]
      %v934 = vmul.f32 %v912, %v932
      %v935 = vmul.f32 %v914, %v933
      %v936 = vsel %vm388, %v928, 0.0
      %937 = vadd.xlane.f32.xlu0 %v936
      %v938 = vpop.xlane.xlu0 %937
      %v939 = vsel %vm388, %v930, 0.0
      %940 = vadd.xlane.f32.xlu0 %v939
      %v941 = vpop.xlane.xlu0 %940
      %v942 = vadd.f32 %v934, %v938
      %v943 = vadd.f32 %v935, %v941
      %944 = vst.msk [vmem:[%s931] sm:$0xff] %vm431, %v942
      %945 = vst.msk [vmem:[%s931 + $0x8] sm:$0xff] %vm431, %v943
      %s946 = scalar_lea.vmem [#allocation4], 48
      %v947 = vld [vmem:[%s946] sm:$0xff]
      %v948 = vld [vmem:[%s946 + $0x8] sm:$0xff]
      %950 = vset.pattern.permute.xlu0 0
      %951 = vperm.xlu0 %950, %v912
      %v952 = vpop.permute.xlu0 %951
      %955 = vset.pattern.permute.xlu0 0
      %956 = vperm.xlu0 %955, %v914
      %v957 = vpop.permute.xlu0 %956
      %v959 = vmul.f32 %v952, %v947
      %v960 = vmul.f32 %v957, %v948
      %v961 = vpack.c.bf16 %v930, %v928
      %962 = vrot.lane.b32.xlu0 %v453, 104
      %v963 = vpop.permute.xlu0 %962
      %v966 = vsel %vm388, %v961, 0
      %968 = vmatprep.subr.bf16.mxu0 0
      %969 = vmatpush1.bf16.msra.mxu0 0
      %970 = vmatprep.subr.bf16.mxu0 0
      %971 = vmatpush1.bf16.msra.mxu0 0
      %972 = vmatprep.subr.bf16.mxu0 0
      %973 = vmatpush1.bf16.msra.mxu0 0
      %974 = vmatprep.subr.bf16.mxu0 0
      %975 = vmatpush1.bf16.msra.mxu0 0
      %976 = vmatprep.subr.bf16.mxu0 0
      %977 = vmatpush1.bf16.msra.mxu0 0
      %978 = vmatprep.subr.bf16.mxu0 0
      %979 = vmatpush1.bf16.msra.mxu0 0
      %980 = vmatprep.subr.bf16.mxu0 0
      %981 = vmatpush1.bf16.msra.mxu0 0
      %982 = vmatprep.subr.bf16.mxu0 0
      %983 = vmatpush1.bf16.msra.mxu0 %v963
      %984 = vmatprep.subr.bf16.mxu0 0
      %985 = vmatpush2.bf16.msra.mxu0 0
      %986 = vmatprep.subr.bf16.mxu0 0
      %987 = vmatpush2.bf16.msra.mxu0 0
      %988 = vmatprep.subr.bf16.mxu0 0
      %989 = vmatpush2.bf16.msra.mxu0 0
      %990 = vmatprep.subr.bf16.mxu0 0
      %991 = vmatpush2.bf16.msra.mxu0 0
      %992 = vmatprep.subr.bf16.mxu0 0
      %993 = vmatpush2.bf16.msra.mxu0 0
      %994 = vmatprep.subr.bf16.mxu0 0
      %995 = vmatpush2.bf16.msra.mxu0 0
      %996 = vmatprep.subr.bf16.mxu0 0
      %997 = vmatpush2.bf16.msra.mxu0 0
      %998 = vmatprep.subr.bf16.mxu0 0
      %999 = vmatpush2.bf16.msra.mxu0 0
      %1000 = vmatprep.mubr.bf16.mxu0 0
      %1001 = vmatmul.mubr.bf16.gmra.mxu0 %v966
      %v1002 = vpop.f32.mrf.mxu0
      %v1003 = vadd.f32 0.0, %v1002
      %v1004 = vpop.f32.mrf.mxu0
      %v1005 = vpop.f32.mrf.mxu0
      %v1006 = vadd.f32 0.0, %v1005
      %v1007 = vpop.f32.mrf.mxu0
      %1008 = vdwg.mxu0
      %v1009 = vadd.f32 %v959, %v1003
      %v1010 = vadd.f32 %v960, %v1006
      %1011 = vst.msk [vmem:[%s946] sm:$0xff] %vm336, %v1009
      %1012 = vst.msk [vmem:[%s946 + $0x8] sm:$0xff] %vm336, %v1010
      %1013 = vst.msk [vmem:[%s898] sm:$0xff] %vm431, %v907
      %1014 = vst.msk [vmem:[%s898 + $0x8] sm:$0xff] %vm431, %v908
      // Predicated region
      $region37: #{_lambda_.4} parent=31 // pred_check
        %p1015 = pneg %p290
      $region38: #{_lambda_.4} parent=31 // pred_check_branch
        %1017 = sbr.rel (%p1015) target = $region40
      $region39: #{_lambda_.4} parent=31 // pred_region
        %v1018 = vld [vmem:[#allocation3] sm:$0xff]
        %v1019 = vld [vmem:[#allocation3 + $0x8] sm:$0xff]
        %v1020 = vrcp.pop %v1018
        %v1021 = vrcp.pop %v1019
        %v1022 = vld [vmem:[#allocation4] sm:$0xff]
        %v1023 = vld [vmem:[#allocation4 + $0x8] sm:$0xff]
        %1025 = vset.pattern.permute.xlu0 0
        %1026 = vperm.xlu0 %1025, %v1020
        %v1027 = vpop.permute.xlu0 %1026
        %1030 = vset.pattern.permute.xlu0 0
        %1031 = vperm.xlu0 %1030, %v1021
        %v1032 = vpop.permute.xlu0 %1031
        %v1034 = vmul.f32 %v1022, %v1027
        %v1035 = vmul.f32 %v1023, %v1032
        %v1036 = vld [vmem:[%s591] sm:$0xff]
        %v1037 = vld [vmem:[%s591 + $0x8] sm:$0xff]
        %v1038 = vrcp.pop %v1036
        %v1039 = vrcp.pop %v1037
        %v1040 = vld [vmem:[%s606] sm:$0xff]
        %v1041 = vld [vmem:[%s606 + $0x8] sm:$0xff]
        %1043 = vset.pattern.permute.xlu0 0
        %1044 = vperm.xlu0 %1043, %v1038
        %v1045 = vpop.permute.xlu0 %1044
        %1048 = vset.pattern.permute.xlu0 0
        %1049 = vperm.xlu0 %1048, %v1039
        %v1050 = vpop.permute.xlu0 %1049
        %v1052 = vmul.f32 %v1040, %v1045
        %v1053 = vmul.f32 %v1041, %v1050
        %v1054 = vld [vmem:[%s761] sm:$0xff]
        %v1055 = vld [vmem:[%s761 + $0x8] sm:$0xff]
        %v1056 = vrcp.pop %v1054
        %v1057 = vrcp.pop %v1055
        %v1058 = vld [vmem:[%s776] sm:$0xff]
        %v1059 = vld [vmem:[%s776 + $0x8] sm:$0xff]
        %1061 = vset.pattern.permute.xlu0 0
        %1062 = vperm.xlu0 %1061, %v1056
        %v1063 = vpop.permute.xlu0 %1062
        %1066 = vset.pattern.permute.xlu0 0
        %1067 = vperm.xlu0 %1066, %v1057
        %v1068 = vpop.permute.xlu0 %1067
        %v1070 = vmul.f32 %v1058, %v1063
        %v1071 = vmul.f32 %v1059, %v1068
        %v1072 = vld [vmem:[%s931] sm:$0xff]
        %v1073 = vld [vmem:[%s931 + $0x8] sm:$0xff]
        %v1074 = vrcp.pop %v1072
        %v1075 = vrcp.pop %v1073
        %v1076 = vld [vmem:[%s946] sm:$0xff]
        %v1077 = vld [vmem:[%s946 + $0x8] sm:$0xff]
        %1079 = vset.pattern.permute.xlu0 0
        %1080 = vperm.xlu0 %1079, %v1074
        %v1081 = vpop.permute.xlu0 %1080
        %1084 = vset.pattern.permute.xlu0 0
        %1085 = vperm.xlu0 %1084, %v1075
        %v1086 = vpop.permute.xlu0 %1085
        %v1088 = vmul.f32 %v1076, %v1081
        %v1089 = vmul.f32 %v1077, %v1086
        %1092 = vrot.lane.b32.xlu0 %v1052, 8
        %v1093 = vpop.permute.xlu0 %1092
        %1094 = vrot.lane.b32.xlu0 %v1053, 8
        %v1095 = vpop.permute.xlu0 %1094
        %1100 = vrot.lane.b32.xlu0 %v1070, 16
        %v1101 = vpop.permute.xlu0 %1100
        %1102 = vrot.lane.b32.xlu0 %v1071, 16
        %v1103 = vpop.permute.xlu0 %1102
        %1108 = vrot.lane.b32.xlu0 %v1088, 24
        %v1109 = vpop.permute.xlu0 %1108
        %1110 = vrot.lane.b32.xlu0 %v1089, 24
        %v1111 = vpop.permute.xlu0 %1110
        %v1114 = vsel %vm336, %v1034, %v1093
        %v1115 = vsel %vm336, %v1035, %v1095
        %v1116 = vsel %vm388, %v1114, %v1101
        %v1117 = vsel %vm388, %v1115, %v1103
        %vm1118 = vcmask 195584
        %v1119 = vsel %vm1118, %v1116, %v1109
        %v1120 = vsel %vm1118, %v1117, %v1111
        %v1121 = vpack.c.bf16 %v1120, %v1119
        %v1123 = vunpack.c.l.b16 %v1121
        %v1124 = vunpack.c.h.b16 %v1121
        %v1125 = vpack.c.b16 %v1123, %v1123
        %v1126 = vpack.c.b16 %v1124, %v1124
        %vm1129 = vcmask 257024
        %1130 = vst.msk [vmem:[%s287] sm:$0xf] %vm1129, %v1125
        %1131 = vst.msk [vmem:[%s287 + $0x4] sm:$0xf] %vm1129, %v1126
      $region40: #{_lambda_.4} parent=31 // pred_fallthru
        _
      %s1132 = smul.u32 2, %s20
      %p1133 = scmp.lt.s32.totalorder %s19, 1
      %s1134 = scalar_select %p1133, %s19, 1
      %p1135 = scmp.lt.s32.totalorder %s1132, 1
      %s1136 = scalar_select %p1135, %s1132, 1
      %s1137 = smul.addr %s1134, 2
      %s1138 = sadd.s32 %s1136, %s1137
      %s1139 = smul.addr %s1138, 4
      %s1140 = scalar_lea.vmem %s3, %s1139
      // Predicated region
      $region41: #{_lambda_.4} parent=31 // pred_check
        %p1141 = pneg %p137
      $region42: #{_lambda_.4} parent=31 // pred_check_branch
        %1143 = sbr.rel (%p1141) target = $region44
      $region43: #{_lambda_.4} parent=31 // pred_region
        %s1144 = smul.u32 2, %s20
      $region44: #{_lambda_.4} parent=31 // pred_fallthru
        _
    $region32: #{_lambda_.4} parent=5 // pred_fallthru
      _
    %p1145 = scmp.le.s32.totalorder 2, %s9
    // Predicated region
    $region45: #{_lambda_.4} parent=5 // pred_check
      %p1146 = pneg %p1145
    $region46: #{_lambda_.4} parent=5 // pred_check_branch
      %1148 = sbr.rel (%p1146) target = $region48
    $region47: #{_lambda_.4} parent=5 // pred_region
      %s1149 = ssub.s32 %s9, 2
      // Predicated region
      $region49: #{_lambda_.4} parent=47 // pred_check
        %p1150 = pneg %p143
      $region50: #{_lambda_.4} parent=47 // pred_check_branch
        %1152 = sbr.rel (%p1150) target = $region52
      $region51: #{_lambda_.4} parent=47 // pred_region
        %s1153 = smul.u32 2, %s23
        %p1154 = scmp.lt.s32.totalorder %s22, 1
        %s1155 = scalar_select %p1154, %s22, 1
        %p1156 = scmp.lt.s32.totalorder %s1153, 1
        %s1157 = scalar_select %p1156, %s1153, 1
        %s1158 = smul.addr %s1155, 2
        %s1159 = sadd.s32 %s1157, %s1158
        %s1160 = smul.addr %s1159, 4
        %s1161 = scalar_lea.vmem %s3, %s1160
      $region52: #{_lambda_.4} parent=47 // pred_fallthru
        _
    $region48: #{_lambda_.4} parent=5 // pred_fallthru
      _
  $region6: #{_lambda_.4} parent=0 // loop_footer
    %s13 = sadd.s32 1, %s9
  $region7: #{_lambda_.4} parent=0 // loop_footer_branch
    %8 = sbr.rel target = $region3
  $region8: #{_lambda_.4} parent=0 // loop_exit
    _

</llo_original>
